<compile_context>
chip_gen: v7x
topology: tpu7x:2x2x1
jax: 0.10.0
libtpu: 0.0.40
codegen_flags: <defaults>
</compile_context>

<pallas_src>
import functools
import math

import numpy as np
import jax
import jax.numpy as jnp
from jax.experimental import pallas as pl
from jax.experimental.pallas import tpu as pltpu


# ----------------------------- in-kernel helpers -----------------------------

def _layer_norm(x, gamma, beta, eps=1e-6):
    # PyTorch nn.LayerNorm (eps=1e-6 as in the reference repo): biased variance.
    mean = jnp.mean(x, axis=-1, keepdims=True)
    var = jnp.mean((x - mean) ** 2, axis=-1, keepdims=True)
    return (x - mean) * jax.lax.rsqrt(var + eps) * gamma + beta


def _split_heads(x2d, H, d, base=0):
    """(N, lanes) -> (H, N, d) via static lane slices + stack (no H-fold activation copy)."""
    return jnp.stack([x2d[:, base + h * d: base + (h + 1) * d] for h in range(H)], axis=0)


def _attention(qh, kh, vh, bias, wo, g, b, x_res, *, B, Lq, Lk, H, d_k, d_v):
    """Scaled-dot-product attention (1/sqrt(d_k) folded into Wq), output projection,
    residual and post-LayerNorm.

    qh : (H, B*Lq, d_k) bf16    kh : (H, B*Lk, d_k) bf16    vh : (H, B*Lk, d_v) bf16
    bias : f32, broadcastable to (H, B, Lq, Lk)  (0 keep / -1e9 masked)
    wo : (H*d_v, D) bf16        g/b : (1, D) f32            x_res : (B*Lq, D) f32
    """
    G = H * B
    qg = qh.reshape(G, Lq, d_k)              # leading-dim regroup only (free)
    kg = kh.reshape(G, Lk, d_k)
    vg = vh.reshape(G, Lk, d_v)

    # Scores + additive mask (broadcast over heads) + stable softmax in f32.
    s = jnp.einsum('gqd,gkd->gqk', qg, kg, preferred_element_type=jnp.float32)
    s = s.reshape(H, B, Lq, Lk) + bias       # hoisted bias, no explicit H-copy
    s = s - jnp.max(s, axis=-1, keepdims=True)
    p = jnp.exp(s)
    p = p / jnp.sum(p, axis=-1, keepdims=True)   # exact divide (matches torch softmax)
    p = p.reshape(G, Lq, Lk).astype(jnp.bfloat16)

    o = jnp.einsum('gqk,gkd->gqd', p, vg, preferred_element_type=jnp.float32)   # (G,Lq,d_v)

    # Merge heads back into lanes, then ONE (B*Lq, H*d_v) @ (H*d_v, D) output matmul.
    o = o.reshape(H, B * Lq, d_v).astype(jnp.bfloat16)
    o_cat = jnp.concatenate([o[h] for h in range(H)], axis=-1)                  # (B*Lq, H*d_v)
    z = jnp.dot(o_cat, wo, preferred_element_type=jnp.float32)                  # (B*Lq, D)

    # dropout(fc(...)) -> identity (eval); residual + post-LayerNorm (f32).
    return _layer_norm(z + x_res, g, b)


def _ffn(x, w1, b1, w2, b2, g, b):
    """PositionwiseFeedForward + residual + post-LayerNorm on (B*L, D)."""
    h = jnp.dot(x.astype(jnp.bfloat16), w1, preferred_element_type=jnp.float32) + b1
    h = jnp.maximum(h, 0.0)
    y = jnp.dot(h.astype(jnp.bfloat16), w2, preferred_element_type=jnp.float32) + b2
    # dropout -> identity (eval); residual + LayerNorm.
    return _layer_norm(y + x, g, b)


# --------------------------------- fused kernel -------------------------------

def decoder_kernel(
    x0_ref, enc_ref, slf_bias_ref, enc_bias_ref, ln0_ref,
    s_wqkv_ref, s_wo_ref, e_wq_ref, e_wkv_ref, e_wo_ref,
    f_w1_ref, f_w2_ref, vec_ref, f_b1_ref,
    o_ref,
    *, B, Lt, Ls, H, d_k, d_v):
    layer = pl.program_id(0)
    Hdk = H * d_k

    # Layer-0 prologue: LayerNorm(embedding + pos-enc); dropout -> identity (eval).
    @pl.when(layer == 0)
    def _():
        ln0 = ln0_ref[...]
        o_ref[...] = _layer_norm(x0_ref[...], ln0[0:1], ln0[1:2])

    x = o_ref[...]                        # (B*Lt, D) f32, VMEM-resident across layers
    enc = enc_ref[...]                    # (B*Ls, D) bf16, VMEM-resident
    vec = vec_ref[...]                    # (7, D) packed per-layer LN / bias vectors

    slf_bias = slf_bias_ref[...]          # (B, Lt, Lt): hoisted causal+pad additive mask
    enc_bias = enc_bias_ref[...][:, None, :]   # (B, 1, Ls): hoisted pad additive mask

    # --- self-attention sublayer: one fused (D, H*(2dk+dv)) projection matmul ---
    qkv = jnp.dot(x.astype(jnp.bfloat16), s_wqkv_ref[...],
                  preferred_element_type=jnp.float32).astype(jnp.bfloat16)
    x = _attention(_split_heads(qkv, H, d_k, 0),
                   _split_heads(qkv, H, d_k, Hdk),
                   _split_heads(qkv, H, d_v, 2 * Hdk),
                   slf_bias, s_wo_ref[...], vec[0:1], vec[1:2], x,
                   B=B, Lq=Lt, Lk=Lt, H=H, d_k=d_k, d_v=d_v)

    # --- encoder-decoder (cross) attention: q from x, fused kv projection from enc ---
    q = jnp.dot(x.astype(jnp.bfloat16), e_wq_ref[...],
                preferred_element_type=jnp.float32).astype(jnp.bfloat16)
    kv = jnp.dot(enc, e_wkv_ref[...],
                 preferred_element_type=jnp.float32).astype(jnp.bfloat16)
    x = _attention(_split_heads(q, H, d_k, 0),
                   _split_heads(kv, H, d_k, 0),
                   _split_heads(kv, H, d_v, Hdk),
                   enc_bias, e_wo_ref[...], vec[2:3], vec[3:4], x,
                   B=B, Lq=Lt, Lk=Ls, H=H, d_k=d_k, d_v=d_v)

    # --- position-wise FFN sublayer ---
    x = _ffn(x, f_w1_ref[...], f_b1_ref[...], f_w2_ref[...], vec[4:5], vec[5:6], vec[6:7])

    o_ref[...] = x                        # carried activation (same block every layer)


# ------------------------------ pallas_call wrapper ----------------------------

def _const_spec(shape):
    return pl.BlockSpec(shape, lambda l: (0,) * len(shape))


def _layer_spec(shape):
    # Leading layer axis indexed by the grid; squeezed out of the kernel ref.
    return pl.BlockSpec((None,) + shape, lambda l: (l,) + (0,) * len(shape))


def _vmem_limit_bytes():
    # Raise scoped VMEM above the 16/32/32 MiB defaults; leave headroom below the
    # physical capacity (128 MiB on v5e/v6e, 64 MiB on v7x).
    try:
        cap = int(pltpu.get_tpu_info().vmem_capacity_bytes)
    except Exception:
        cap = 64 << 20
    return int(min(cap - (8 << 20), 100 << 20))


def fused_decoder(x0, enc, slf_bias, enc_bias, p, *, n_layers, n_head, d_k, d_v,
                  d_model, d_inner, B, Lt, Ls):
    D, H = d_model, n_head
    kernel = functools.partial(decoder_kernel, B=B, Lt=Lt, Ls=Ls, H=H, d_k=d_k, d_v=d_v)
    in_specs = [
        _const_spec((B * Lt, D)),               # x0 = emb + pos (flattened, f32)
        _const_spec((B * Ls, D)),               # enc_output (flattened, bf16)
        _const_spec((B, Lt, Lt)),               # self-attn additive bias (hoisted)
        _const_spec((B, Ls)),                   # cross-attn additive bias (hoisted)
        _const_spec((2, D)),                    # decoder LayerNorm gamma/beta
        # per-layer tensors (stacked over layers, streamed one layer per grid step)
        _layer_spec((D, H * (2 * d_k + d_v))),  # fused self-attn Wq|Wk|Wv (Wq pre-scaled)
        _layer_spec((H * d_v, D)),              # self-attn Wo
        _layer_spec((D, H * d_k)),              # cross-attn Wq (pre-scaled)
        _layer_spec((D, H * (d_k + d_v))),      # fused cross-attn Wk|Wv
        _layer_spec((H * d_v, D)),              # cross-attn Wo
        _layer_spec((D, d_inner)),              # FFN W1
        _layer_spec((d_inner, D)),              # FFN W2
        _layer_spec((7, D)),                    # packed per-layer LN gammas/betas + FFN b2
        _layer_spec((1, d_inner)),              # FFN b1
    ]
    return pl.pallas_call(
        kernel,
        out_shape=jax.ShapeDtypeStruct((B * Lt, D), jnp.float32),
        grid=(n_layers,),
        in_specs=in_specs,
        out_specs=pl.BlockSpec((B * Lt, D), lambda l: (0, 0)),   # VMEM-resident carry
        compiler_params=pltpu.CompilerParams(
            dimension_semantics=("arbitrary",),                  # layers are sequential
            vmem_limit_bytes=_vmem_limit_bytes()),
    )(x0, enc, slf_bias, enc_bias, p["ln0"],
      p["s_wqkv"], p["s_wo"], p["e_wq"], p["e_wkv"], p["e_wo"],
      p["f_w1"], p["f_w2"], p["vecs"], p["f_b1"])


# ------------------------------- parameter setup ------------------------------

def sinusoid_table(n_position, d_hid):
    position = np.arange(n_position, dtype=np.float64)[:, None]
    hid = np.arange(d_hid)[None, :]
    angle = position / np.power(10000.0, 2 * (hid // 2) / d_hid)
    table = np.zeros((n_position, d_hid), dtype=np.float64)
    table[:, 0::2] = np.sin(angle[:, 0::2])
    table[:, 1::2] = np.cos(angle[:, 1::2])
    return jnp.asarray(table, dtype=jnp.float32)


def init_decoder_params(key, *, n_trg_vocab, d_word_vec, n_layers, n_head,
                        d_k, d_v, d_model, d_inner, pad_idx, n_position):
    keys = iter(jax.random.split(key, 4 + n_layers * 12))
    nrm = lambda shp, s=0.1: (s * jax.random.normal(next(keys), shp)).astype(jnp.float32)

    emb = nrm((n_trg_vocab, d_word_vec)).at[pad_idx].set(0.0)   # padding_idx row zeroed

    params = {
        "emb": emb,
        "pos_table": sinusoid_table(n_position, d_word_vec),
        "ln_g": jnp.ones((1, d_model), jnp.float32),
        "ln_b": jnp.zeros((1, d_model), jnp.float32),
        "layers": [],
    }
    for _ in range(n_layers):
        layer = {
            "slf": dict(wq=nrm((d_model, n_head * d_k)), wk=nrm((d_model, n_head * d_k)),
                        wv=nrm((d_model, n_head * d_v)), wo=nrm((n_head * d_v, d_model)),
                        g=jnp.ones((1, d_model), jnp.float32),
                        b=jnp.zeros((1, d_model), jnp.float32)),
            "enc": dict(wq=nrm((d_model, n_head * d_k)), wk=nrm((d_model, n_head * d_k)),
                        wv=nrm((d_model, n_head * d_v)), wo=nrm((n_head * d_v, d_model)),
                        g=jnp.ones((1, d_model), jnp.float32),
                        b=jnp.zeros((1, d_model), jnp.float32)),
            "ffn": dict(w1=nrm((d_model, d_inner)), b1=jnp.zeros((1, d_inner), jnp.float32),
                        w2=nrm((d_inner, d_model)), b2=jnp.zeros((1, d_model), jnp.float32),
                        g=jnp.ones((1, d_model), jnp.float32),
                        b=jnp.zeros((1, d_model), jnp.float32)),
        }
        params["layers"].append(layer)
    return params


def pack_decoder_params(params, *, n_head, d_k, d_v):
    """One-time transform into kernel layout:
      * self-attn q/k/v fused to (D, H*(2dk+dv)); cross-attn k/v fused to (D, H*(dk+dv))
      * 1/sqrt(d_k) folded into every Wq
      * matmul weights bf16 (MXU-native); LN params / biases stay f32
      * 7 per-layer (1, D) vectors coalesced into one (7, D) tensor
      * per-layer tensors stacked along a leading layer axis (the kernel grid axis)
    """
    scale = 1.0 / math.sqrt(d_k)

    def stack(fn):
        return jnp.stack([fn(layer) for layer in params["layers"]])

    return {
        "ln0": jnp.concatenate([params["ln_g"], params["ln_b"]], axis=0),        # (2, D)
        "s_wqkv": stack(lambda l: jnp.concatenate(
            [l["slf"]["wq"] * scale, l["slf"]["wk"], l["slf"]["wv"]],
            axis=1)).astype(jnp.bfloat16),
        "s_wo": stack(lambda l: l["slf"]["wo"]).astype(jnp.bfloat16),
        "e_wq": stack(lambda l: l["enc"]["wq"] * scale).astype(jnp.bfloat16),
        "e_wkv": stack(lambda l: jnp.concatenate(
            [l["enc"]["wk"], l["enc"]["wv"]], axis=1)).astype(jnp.bfloat16),
        "e_wo": stack(lambda l: l["enc"]["wo"]).astype(jnp.bfloat16),
        "f_w1": stack(lambda l: l["ffn"]["w1"]).astype(jnp.bfloat16),
        "f_w2": stack(lambda l: l["ffn"]["w2"]).astype(jnp.bfloat16),
        "vecs": stack(lambda l: jnp.concatenate(
            [l["slf"]["g"], l["slf"]["b"], l["enc"]["g"], l["enc"]["b"],
             l["ffn"]["b2"], l["ffn"]["g"], l["ffn"]["b"]], axis=0)),            # (7, D)
        "f_b1": stack(lambda l: l["ffn"]["b1"]),                                 # (1, d_inner)
    }


# --------------------------------- forward ------------------------------------

def decoder_forward(params, packed, trg_seq, trg_pad_mask, enc_output, src_pad_mask, *,
                    n_layers, n_head, d_k, d_v, d_model, d_inner, scale_emb=False):
    """Decoder.forward.  trg_mask = pad(trg) & subsequent and src_mask = pad(src) enter
    the kernel as small additive-bias tensors built once here (same semantics as the
    reference repo's get_pad_mask & get_subsequent_mask + masked_fill(-1e9))."""
    B, Lt = trg_seq.shape
    Ls = enc_output.shape[1]

    # Glue (plain JAX): embedding gather, optional scaling, positional encoding.
    x = jnp.take(params["emb"], trg_seq, axis=0)                 # (B, Lt, D)
    if scale_emb:
        x = x * (d_model ** 0.5)
    x = x + params["pos_table"][:Lt][None]                       # dropout -> identity
    x0 = x.reshape(B * Lt, d_model).astype(jnp.float32)
    enc = enc_output.astype(jnp.bfloat16).reshape(B * Ls, d_model)   # kv source only

    # Additive masks precomputed ONCE (hoisted out of the per-layer kernel loop).
    trg_keep = trg_pad_mask.astype(jnp.float32)                  # (B, Lt) 1=keep / 0=pad
    src_keep = src_pad_mask.astype(jnp.float32)                  # (B, Ls)
    causal = jnp.tril(jnp.ones((Lt, Lt), jnp.float32))           # subsequent mask
    slf_bias = (trg_keep[:, None, :] * causal[None] - 1.0) * 1e9     # (B, Lt, Lt)
    enc_bias = (src_keep - 1.0) * 1e9                                # (B, Ls)

    out = fused_decoder(x0, enc, slf_bias, enc_bias, packed,
                        n_layers=n_layers, n_head=n_head, d_k=d_k, d_v=d_v,
                        d_model=d_model, d_inner=d_inner, B=B, Lt=Lt, Ls=Ls)
    return out.reshape(B, Lt, d_model)


# ----------------------------------- main --------------------------------------

if __name__ == "__main__":
    # small config consistent with the module
    n_trg_vocab, pad_idx = 50, 0
    d_word_vec = d_model = 32
    n_layers, n_head, d_k, d_v, d_inner = 2, 2, 16, 16, 64
    n_position = 200
    B, Lt, Ls = 2, 8, 8

    key = jax.random.PRNGKey(0)
    k_par, k_trg, k_enc = jax.random.split(key, 3)

    params = init_decoder_params(
        k_par, n_trg_vocab=n_trg_vocab, d_word_vec=d_word_vec, n_layers=n_layers,
        n_head=n_head, d_k=d_k, d_v=d_v, d_model=d_model, d_inner=d_inner,
        pad_idx=pad_idx, n_position=n_position)
    packed = pack_decoder_params(params, n_head=n_head, d_k=d_k, d_v=d_v)

    # target tokens with trailing padding
    trg_seq = jax.random.randint(k_trg, (B, Lt), 1, n_trg_vocab).astype(jnp.int32)
    trg_seq = trg_seq.at[:, -2:].set(pad_idx)

    # pad keep-vectors (the causal / subsequent part is combined in the wrapper)
    trg_pad_mask = (trg_seq != pad_idx)                          # (B, Lt) bool
    src_pad_mask = jnp.ones((B, Ls), dtype=bool)                 # (B, Ls) bool

    # encoder output
    enc_output = jax.random.normal(k_enc, (B, Ls, d_model), dtype=jnp.float32)

    out = decoder_forward(params, packed, trg_seq, trg_pad_mask, enc_output, src_pad_mask,
                          n_layers=n_layers, n_head=n_head, d_k=d_k, d_v=d_v,
                          d_model=d_model, d_inner=d_inner, scale_emb=False)
    out = jax.block_until_ready(out)

    assert out.shape == (B, Lt, d_model)
    assert bool(jnp.all(jnp.isfinite(out)))
    print("KERNEL_OK")
</pallas_src>

<mosaic_0001>
module attributes {stable_mosaic.version = 11 : i64} {
  func.func @decoder_kernel(%arg0: i32, %arg1: memref<16x32xf32, #tpu.memory_space<vmem>>, %arg2: memref<16x32xbf16, #tpu.memory_space<vmem>>, %arg3: memref<2x8x8xf32, #tpu.memory_space<vmem>>, %arg4: memref<2x8xf32, #tpu.memory_space<vmem>>, %arg5: memref<2x32xf32, #tpu.memory_space<vmem>>, %arg6: memref<1x32x96xbf16, #tpu.memory_space<vmem>>, %arg7: memref<1x32x32xbf16, #tpu.memory_space<vmem>>, %arg8: memref<1x32x32xbf16, #tpu.memory_space<vmem>>, %arg9: memref<1x32x64xbf16, #tpu.memory_space<vmem>>, %arg10: memref<1x32x32xbf16, #tpu.memory_space<vmem>>, %arg11: memref<1x32x64xbf16, #tpu.memory_space<vmem>>, %arg12: memref<1x64x32xbf16, #tpu.memory_space<vmem>>, %arg13: memref<1x7x32xf32, #tpu.memory_space<vmem>>, %arg14: memref<1x1x64xf32, #tpu.memory_space<vmem>>, %arg15: memref<16x32xf32, #tpu.memory_space<vmem>>) attributes {dimension_semantics = [#tpu.dimension_semantics<arbitrary>], iteration_bounds = array<i64: 2>, scalar_prefetch = 0 : i64, scratch_operands = 0 : i64, tpu.core_type = #tpu.core_type<tc>, window_params = [{pipeline_mode = #tpu.pipeline_mode<synchronous>, transform_indices = @transform_0, window_bounds = array<i64: 16, 32>}, {pipeline_mode = #tpu.pipeline_mode<synchronous>, transform_indices = @transform_1, window_bounds = array<i64: 16, 32>}, {pipeline_mode = #tpu.pipeline_mode<synchronous>, transform_indices = @transform_2, window_bounds = array<i64: 2, 8, 8>}, {pipeline_mode = #tpu.pipeline_mode<synchronous>, transform_indices = @transform_3, window_bounds = array<i64: 2, 8>}, {pipeline_mode = #tpu.pipeline_mode<synchronous>, transform_indices = @transform_4, window_bounds = array<i64: 2, 32>}, {transform_indices = @transform_5, window_bounds = array<i64: 1, 32, 96>}, {transform_indices = @transform_6, window_bounds = array<i64: 1, 32, 32>}, {transform_indices = @transform_7, window_bounds = array<i64: 1, 32, 32>}, {transform_indices = @transform_8, window_bounds = array<i64: 1, 32, 64>}, {transform_indices = @transform_9, window_bounds = array<i64: 1, 32, 32>}, {transform_indices = @transform_10, window_bounds = array<i64: 1, 32, 64>}, {transform_indices = @transform_11, window_bounds = array<i64: 1, 64, 32>}, {transform_indices = @transform_12, window_bounds = array<i64: 1, 7, 32>}, {transform_indices = @transform_13, window_bounds = array<i64: 1, 1, 64>}, {pipeline_mode = #tpu.pipeline_mode<synchronous>, transform_indices = @transform_14, window_bounds = array<i64: 16, 32>}]} {
    %c0_i32 = arith.constant 0 : i32
    %0 = arith.cmpi eq, %arg0, %c0_i32 : i32
    %1 = arith.extui %0 : i1 to i32
    %c0_i32_0 = arith.constant 0 : i32
    %2 = arith.cmpi ne, %1, %c0_i32_0 : i32
    scf.if %2 {
      %c0_68 = arith.constant 0 : index
      %c0_69 = arith.constant 0 : index
      %207 = vector.load %arg5[%c0_68, %c0_69] : memref<2x32xf32, #tpu.memory_space<vmem>>, vector<2x32xf32>
      %c0_70 = arith.constant 0 : index
      %c0_71 = arith.constant 0 : index
      %208 = vector.load %arg1[%c0_70, %c0_71] : memref<16x32xf32, #tpu.memory_space<vmem>>, vector<16x32xf32>
      %209 = vector.extract_strided_slice %207 {offsets = [0, 0], sizes = [1, 32], strides = [1, 1]} : vector<2x32xf32> to vector<1x32xf32>
      %210 = vector.extract_strided_slice %207 {offsets = [1, 0], sizes = [1, 32], strides = [1, 1]} : vector<2x32xf32> to vector<1x32xf32>
      %cst_72 = arith.constant dense<0.000000e+00> : vector<16xf32>
      %211 = vector.multi_reduction <add>, %208, %cst_72 [1] : vector<16x32xf32> to vector<16xf32>
      %212 = vector.shape_cast %211 : vector<16xf32> to vector<16x1xf32>
      %cst_73 = arith.constant 3.200000e+01 : f32
      %213 = vector.broadcast %cst_73 : f32 to vector<16x1xf32>
      %214 = arith.divf %212, %213 : vector<16x1xf32>
      %215 = vector.broadcast %214 : vector<16x1xf32> to vector<16x32xf32>
      %216 = arith.subf %208, %215 : vector<16x32xf32>
      %217 = arith.mulf %216, %216 : vector<16x32xf32>
      %cst_74 = arith.constant dense<0.000000e+00> : vector<16xf32>
      %218 = vector.multi_reduction <add>, %217, %cst_74 [1] : vector<16x32xf32> to vector<16xf32>
      %219 = vector.shape_cast %218 : vector<16xf32> to vector<16x1xf32>
      %cst_75 = arith.constant 3.200000e+01 : f32
      %220 = vector.broadcast %cst_75 : f32 to vector<16x1xf32>
      %221 = arith.divf %219, %220 : vector<16x1xf32>
      %222 = vector.broadcast %214 : vector<16x1xf32> to vector<16x32xf32>
      %223 = arith.subf %208, %222 : vector<16x32xf32>
      %cst_76 = arith.constant 9.99999997E-7 : f32
      %224 = vector.broadcast %cst_76 : f32 to vector<16x1xf32>
      %225 = arith.addf %221, %224 : vector<16x1xf32>
      %226 = math.rsqrt %225 : vector<16x1xf32>
      %227 = vector.broadcast %226 : vector<16x1xf32> to vector<16x32xf32>
      %228 = arith.mulf %223, %227 : vector<16x32xf32>
      %229 = vector.broadcast %209 : vector<1x32xf32> to vector<16x32xf32>
      %230 = arith.mulf %228, %229 : vector<16x32xf32>
      %231 = vector.broadcast %210 : vector<1x32xf32> to vector<16x32xf32>
      %232 = arith.addf %230, %231 : vector<16x32xf32>
      %c0_77 = arith.constant 0 : index
      %c0_78 = arith.constant 0 : index
      %233 = vector.load %arg15[%c0_77, %c0_78] : memref<16x32xf32, #tpu.memory_space<vmem>>, vector<16x32xf32>
      tpu.vector_store %arg15[%c0_77, %c0_78], %232 {strides = array<i32>} : memref<16x32xf32, #tpu.memory_space<vmem>>, vector<16x32xf32>,
    } else {
    }
    %c0 = arith.constant 0 : index
    %c0_1 = arith.constant 0 : index
    %3 = vector.load %arg15[%c0, %c0_1] : memref<16x32xf32, #tpu.memory_space<vmem>>, vector<16x32xf32>
    %c0_2 = arith.constant 0 : index
    %c0_3 = arith.constant 0 : index
    %4 = vector.load %arg2[%c0_2, %c0_3] : memref<16x32xbf16, #tpu.memory_space<vmem>>, vector<16x32xbf16>
    %c0_4 = arith.constant 0 : index
    %c0_5 = arith.constant 0 : index
    %c0_6 = arith.constant 0 : index
    %5 = vector.load %arg13[%c0_4, %c0_5, %c0_6] : memref<1x7x32xf32, #tpu.memory_space<vmem>>, vector<1x7x32xf32>
    %6 = vector.shape_cast %5 : vector<1x7x32xf32> to vector<7x32xf32>
    %c0_7 = arith.constant 0 : index
    %c0_8 = arith.constant 0 : index
    %c0_9 = arith.constant 0 : index
    %7 = vector.load %arg3[%c0_7, %c0_8, %c0_9] : memref<2x8x8xf32, #tpu.memory_space<vmem>>, vector<2x8x8xf32>
    %c0_10 = arith.constant 0 : index
    %c0_11 = arith.constant 0 : index
    %8 = vector.load %arg4[%c0_10, %c0_11] : memref<2x8xf32, #tpu.memory_space<vmem>>, vector<2x8xf32>
    %9 = vector.shape_cast %8 : vector<2x8xf32> to vector<2x1x8xf32>
    %10 = arith.truncf %3 : vector<16x32xf32> to vector<16x32xbf16>
    %c0_12 = arith.constant 0 : index
    %c0_13 = arith.constant 0 : index
    %c0_14 = arith.constant 0 : index
    %11 = vector.load %arg6[%c0_12, %c0_13, %c0_14] : memref<1x32x96xbf16, #tpu.memory_space<vmem>>, vector<1x32x96xbf16>
    %12 = vector.shape_cast %11 : vector<1x32x96xbf16> to vector<32x96xbf16>
    %cst = arith.constant dense<0.000000e+00> : vector<16x96xf32>
    %13 = tpu.matmul %10, %12, %cst {dimension_numbers = #tpu.dot_dimension_numbers<[1], [0], [0], [1], [0, 0, 1, 1], [], []>} : vector<16x32xbf16>, vector<32x96xbf16>, vector<16x96xf32> -> vector<16x96xf32>
    %14 = arith.truncf %13 : vector<16x96xf32> to vector<16x96xbf16>
    %15 = vector.extract_strided_slice %14 {offsets = [0, 0], sizes = [16, 16], strides = [1, 1]} : vector<16x96xbf16> to vector<16x16xbf16>
    %16 = vector.extract_strided_slice %14 {offsets = [0, 16], sizes = [16, 16], strides = [1, 1]} : vector<16x96xbf16> to vector<16x16xbf16>
    %17 = vector.shape_cast %15 : vector<16x16xbf16> to vector<1x16x16xbf16>
    %18 = vector.shape_cast %16 : vector<16x16xbf16> to vector<1x16x16xbf16>
    %19 = tpu.concatenate %17, %18 in 0 : vector<1x16x16xbf16>, vector<1x16x16xbf16> -> vector<2x16x16xbf16>
    %20 = vector.extract_strided_slice %14 {offsets = [0, 32], sizes = [16, 16], strides = [1, 1]} : vector<16x96xbf16> to vector<16x16xbf16>
    %21 = vector.extract_strided_slice %14 {offsets = [0, 48], sizes = [16, 16], strides = [1, 1]} : vector<16x96xbf16> to vector<16x16xbf16>
    %22 = vector.shape_cast %20 : vector<16x16xbf16> to vector<1x16x16xbf16>
    %23 = vector.shape_cast %21 : vector<16x16xbf16> to vector<1x16x16xbf16>
    %24 = tpu.concatenate %22, %23 in 0 : vector<1x16x16xbf16>, vector<1x16x16xbf16> -> vector<2x16x16xbf16>
    %25 = vector.extract_strided_slice %14 {offsets = [0, 64], sizes = [16, 16], strides = [1, 1]} : vector<16x96xbf16> to vector<16x16xbf16>
    %26 = vector.extract_strided_slice %14 {offsets = [0, 80], sizes = [16, 16], strides = [1, 1]} : vector<16x96xbf16> to vector<16x16xbf16>
    %27 = vector.shape_cast %25 : vector<16x16xbf16> to vector<1x16x16xbf16>
    %28 = vector.shape_cast %26 : vector<16x16xbf16> to vector<1x16x16xbf16>
    %29 = tpu.concatenate %27, %28 in 0 : vector<1x16x16xbf16>, vector<1x16x16xbf16> -> vector<2x16x16xbf16>
    %c0_15 = arith.constant 0 : index
    %c0_16 = arith.constant 0 : index
    %c0_17 = arith.constant 0 : index
    %30 = vector.load %arg7[%c0_15, %c0_16, %c0_17] : memref<1x32x32xbf16, #tpu.memory_space<vmem>>, vector<1x32x32xbf16>
    %31 = vector.shape_cast %30 : vector<1x32x32xbf16> to vector<32x32xbf16>
    %32 = vector.extract_strided_slice %6 {offsets = [0, 0], sizes = [1, 32], strides = [1, 1]} : vector<7x32xf32> to vector<1x32xf32>
    %33 = vector.extract_strided_slice %6 {offsets = [1, 0], sizes = [1, 32], strides = [1, 1]} : vector<7x32xf32> to vector<1x32xf32>
    %34 = vector.shape_cast %19 : vector<2x16x16xbf16> to vector<4x8x16xbf16>
    %35 = vector.shape_cast %24 : vector<2x16x16xbf16> to vector<4x8x16xbf16>
    %36 = vector.shape_cast %29 : vector<2x16x16xbf16> to vector<4x8x16xbf16>
    "tpu.trace_start"() <{level = 10 : i32, message = "gqd,gkd->gqk"}> : () -> ()
    %cst_18 = arith.constant dense<0.000000e+00> : vector<4x8x8xf32>
    %37 = tpu.matmul %34, %35, %cst_18 {dimension_numbers = #tpu.dot_dimension_numbers<[2], [2], [1], [1], [0, 0, 0, 1, 1, 1], [0], [0]>} : vector<4x8x16xbf16>, vector<4x8x16xbf16>, vector<4x8x8xf32> -> vector<4x8x8xf32>
    "tpu.trace_stop"() : () -> ()
    %38 = vector.shape_cast %37 : vector<4x8x8xf32> to vector<2x2x8x8xf32>
    %39 = vector.shape_cast %7 : vector<2x8x8xf32> to vector<1x2x8x8xf32>
    %40 = vector.broadcast %39 : vector<1x2x8x8xf32> to vector<2x2x8x8xf32>
    %41 = arith.addf %38, %40 : vector<2x2x8x8xf32>
    %cst_19 = arith.constant dense<0xFF800000> : vector<2x2x8xf32>
    %42 = vector.multi_reduction <maximumf>, %41, %cst_19 [3] : vector<2x2x8x8xf32> to vector<2x2x8xf32>
    %43 = vector.shape_cast %42 : vector<2x2x8xf32> to vector<2x2x8x1xf32>
    %44 = vector.broadcast %43 : vector<2x2x8x1xf32> to vector<2x2x8x8xf32>
    %45 = arith.subf %41, %44 : vector<2x2x8x8xf32>
    %46 = math.exp %45 : vector<2x2x8x8xf32>
    %cst_20 = arith.constant dense<0.000000e+00> : vector<2x2x8xf32>
    %47 = vector.multi_reduction <add>, %46, %cst_20 [3] : vector<2x2x8x8xf32> to vector<2x2x8xf32>
    %48 = vector.shape_cast %47 : vector<2x2x8xf32> to vector<2x2x8x1xf32>
    %49 = vector.broadcast %48 : vector<2x2x8x1xf32> to vector<2x2x8x8xf32>
    %50 = arith.divf %46, %49 : vector<2x2x8x8xf32>
    %51 = vector.shape_cast %50 : vector<2x2x8x8xf32> to vector<4x8x8xf32>
    %52 = arith.truncf %51 : vector<4x8x8xf32> to vector<4x8x8xbf16>
    "tpu.trace_start"() <{level = 10 : i32, message = "gqk,gkd->gqd"}> : () -> ()
    %cst_21 = arith.constant dense<0.000000e+00> : vector<4x8x16xf32>
    %53 = tpu.matmul %52, %36, %cst_21 {dimension_numbers = #tpu.dot_dimension_numbers<[2], [1], [1], [2], [0, 0, 0, 1, 1, 2], [0], [0]>} : vector<4x8x8xbf16>, vector<4x8x16xbf16>, vector<4x8x16xf32> -> vector<4x8x16xf32>
    "tpu.trace_stop"() : () -> ()
    %54 = vector.shape_cast %53 : vector<4x8x16xf32> to vector<2x16x16xf32>
    %55 = arith.truncf %54 : vector<2x16x16xf32> to vector<2x16x16xbf16>
    %56 = vector.extract_strided_slice %55 {offsets = [0, 0, 0], sizes = [1, 16, 16], strides = [1, 1, 1]} : vector<2x16x16xbf16> to vector<1x16x16xbf16>
    %57 = vector.shape_cast %56 : vector<1x16x16xbf16> to vector<16x16xbf16>
    %58 = vector.extract_strided_slice %55 {offsets = [1, 0, 0], sizes = [1, 16, 16], strides = [1, 1, 1]} : vector<2x16x16xbf16> to vector<1x16x16xbf16>
    %59 = vector.shape_cast %58 : vector<1x16x16xbf16> to vector<16x16xbf16>
    %60 = tpu.concatenate %57, %59 in 1 : vector<16x16xbf16>, vector<16x16xbf16> -> vector<16x32xbf16>
    %cst_22 = arith.constant dense<0.000000e+00> : vector<16x32xf32>
    %61 = tpu.matmul %60, %31, %cst_22 {dimension_numbers = #tpu.dot_dimension_numbers<[1], [0], [0], [1], [0, 0, 1, 1], [], []>} : vector<16x32xbf16>, vector<32x32xbf16>, vector<16x32xf32> -> vector<16x32xf32>
    %62 = arith.addf %61, %3 : vector<16x32xf32>
    %cst_23 = arith.constant dense<0.000000e+00> : vector<16xf32>
    %63 = vector.multi_reduction <add>, %62, %cst_23 [1] : vector<16x32xf32> to vector<16xf32>
    %64 = vector.shape_cast %63 : vector<16xf32> to vector<16x1xf32>
    %cst_24 = arith.constant 3.200000e+01 : f32
    %65 = vector.broadcast %cst_24 : f32 to vector<16x1xf32>
    %66 = arith.divf %64, %65 : vector<16x1xf32>
    %67 = vector.broadcast %66 : vector<16x1xf32> to vector<16x32xf32>
    %68 = arith.subf %62, %67 : vector<16x32xf32>
    %69 = arith.mulf %68, %68 : vector<16x32xf32>
    %cst_25 = arith.constant dense<0.000000e+00> : vector<16xf32>
    %70 = vector.multi_reduction <add>, %69, %cst_25 [1] : vector<16x32xf32> to vector<16xf32>
    %71 = vector.shape_cast %70 : vector<16xf32> to vector<16x1xf32>
    %cst_26 = arith.constant 3.200000e+01 : f32
    %72 = vector.broadcast %cst_26 : f32 to vector<16x1xf32>
    %73 = arith.divf %71, %72 : vector<16x1xf32>
    %74 = vector.broadcast %66 : vector<16x1xf32> to vector<16x32xf32>
    %75 = arith.subf %62, %74 : vector<16x32xf32>
    %cst_27 = arith.constant 9.99999997E-7 : f32
    %76 = vector.broadcast %cst_27 : f32 to vector<16x1xf32>
    %77 = arith.addf %73, %76 : vector<16x1xf32>
    %78 = math.rsqrt %77 : vector<16x1xf32>
    %79 = vector.broadcast %78 : vector<16x1xf32> to vector<16x32xf32>
    %80 = arith.mulf %75, %79 : vector<16x32xf32>
    %81 = vector.broadcast %32 : vector<1x32xf32> to vector<16x32xf32>
    %82 = arith.mulf %80, %81 : vector<16x32xf32>
    %83 = vector.broadcast %33 : vector<1x32xf32> to vector<16x32xf32>
    %84 = arith.addf %82, %83 : vector<16x32xf32>
    %85 = arith.truncf %84 : vector<16x32xf32> to vector<16x32xbf16>
    %c0_28 = arith.constant 0 : index
    %c0_29 = arith.constant 0 : index
    %c0_30 = arith.constant 0 : index
    %86 = vector.load %arg8[%c0_28, %c0_29, %c0_30] : memref<1x32x32xbf16, #tpu.memory_space<vmem>>, vector<1x32x32xbf16>
    %87 = vector.shape_cast %86 : vector<1x32x32xbf16> to vector<32x32xbf16>
    %cst_31 = arith.constant dense<0.000000e+00> : vector<16x32xf32>
    %88 = tpu.matmul %85, %87, %cst_31 {dimension_numbers = #tpu.dot_dimension_numbers<[1], [0], [0], [1], [0, 0, 1, 1], [], []>} : vector<16x32xbf16>, vector<32x32xbf16>, vector<16x32xf32> -> vector<16x32xf32>
    %89 = arith.truncf %88 : vector<16x32xf32> to vector<16x32xbf16>
    %c0_32 = arith.constant 0 : index
    %c0_33 = arith.constant 0 : index
    %c0_34 = arith.constant 0 : index
    %90 = vector.load %arg9[%c0_32, %c0_33, %c0_34] : memref<1x32x64xbf16, #tpu.memory_space<vmem>>, vector<1x32x64xbf16>
    %91 = vector.shape_cast %90 : vector<1x32x64xbf16> to vector<32x64xbf16>
    %cst_35 = arith.constant dense<0.000000e+00> : vector<16x64xf32>
    %92 = tpu.matmul %4, %91, %cst_35 {dimension_numbers = #tpu.dot_dimension_numbers<[1], [0], [0], [1], [0, 0, 1, 1], [], []>} : vector<16x32xbf16>, vector<32x64xbf16>, vector<16x64xf32> -> vector<16x64xf32>
    %93 = arith.truncf %92 : vector<16x64xf32> to vector<16x64xbf16>
    %94 = vector.extract_strided_slice %89 {offsets = [0, 0], sizes = [16, 16], strides = [1, 1]} : vector<16x32xbf16> to vector<16x16xbf16>
    %95 = vector.extract_strided_slice %89 {offsets = [0, 16], sizes = [16, 16], strides = [1, 1]} : vector<16x32xbf16> to vector<16x16xbf16>
    %96 = vector.shape_cast %94 : vector<16x16xbf16> to vector<1x16x16xbf16>
    %97 = vector.shape_cast %95 : vector<16x16xbf16> to vector<1x16x16xbf16>
    %98 = tpu.concatenate %96, %97 in 0 : vector<1x16x16xbf16>, vector<1x16x16xbf16> -> vector<2x16x16xbf16>
    %99 = vector.extract_strided_slice %93 {offsets = [0, 0], sizes = [16, 16], strides = [1, 1]} : vector<16x64xbf16> to vector<16x16xbf16>
    %100 = vector.extract_strided_slice %93 {offsets = [0, 16], sizes = [16, 16], strides = [1, 1]} : vector<16x64xbf16> to vector<16x16xbf16>
    %101 = vector.shape_cast %99 : vector<16x16xbf16> to vector<1x16x16xbf16>
    %102 = vector.shape_cast %100 : vector<16x16xbf16> to vector<1x16x16xbf16>
    %103 = tpu.concatenate %101, %102 in 0 : vector<1x16x16xbf16>, vector<1x16x16xbf16> -> vector<2x16x16xbf16>
    %104 = vector.extract_strided_slice %93 {offsets = [0, 32], sizes = [16, 16], strides = [1, 1]} : vector<16x64xbf16> to vector<16x16xbf16>
    %105 = vector.extract_strided_slice %93 {offsets = [0, 48], sizes = [16, 16], strides = [1, 1]} : vector<16x64xbf16> to vector<16x16xbf16>
    %106 = vector.shape_cast %104 : vector<16x16xbf16> to vector<1x16x16xbf16>
    %107 = vector.shape_cast %105 : vector<16x16xbf16> to vector<1x16x16xbf16>
    %108 = tpu.concatenate %106, %107 in 0 : vector<1x16x16xbf16>, vector<1x16x16xbf16> -> vector<2x16x16xbf16>
    %c0_36 = arith.constant 0 : index
    %c0_37 = arith.constant 0 : index
    %c0_38 = arith.constant 0 : index
    %109 = vector.load %arg10[%c0_36, %c0_37, %c0_38] : memref<1x32x32xbf16, #tpu.memory_space<vmem>>, vector<1x32x32xbf16>
    %110 = vector.shape_cast %109 : vector<1x32x32xbf16> to vector<32x32xbf16>
    %111 = vector.extract_strided_slice %6 {offsets = [2, 0], sizes = [1, 32], strides = [1, 1]} : vector<7x32xf32> to vector<1x32xf32>
    %112 = vector.extract_strided_slice %6 {offsets = [3, 0], sizes = [1, 32], strides = [1, 1]} : vector<7x32xf32> to vector<1x32xf32>
    %113 = vector.shape_cast %98 : vector<2x16x16xbf16> to vector<4x8x16xbf16>
    %114 = vector.shape_cast %103 : vector<2x16x16xbf16> to vector<4x8x16xbf16>
    %115 = vector.shape_cast %108 : vector<2x16x16xbf16> to vector<4x8x16xbf16>
    "tpu.trace_start"() <{level = 10 : i32, message = "gqd,gkd->gqk"}> : () -> ()
    %cst_39 = arith.constant dense<0.000000e+00> : vector<4x8x8xf32>
    %116 = tpu.matmul %113, %114, %cst_39 {dimension_numbers = #tpu.dot_dimension_numbers<[2], [2], [1], [1], [0, 0, 0, 1, 1, 1], [0], [0]>} : vector<4x8x16xbf16>, vector<4x8x16xbf16>, vector<4x8x8xf32> -> vector<4x8x8xf32>
    "tpu.trace_stop"() : () -> ()
    %117 = vector.shape_cast %116 : vector<4x8x8xf32> to vector<2x2x8x8xf32>
    %118 = vector.shape_cast %9 : vector<2x1x8xf32> to vector<1x2x1x8xf32>
    %119 = vector.broadcast %118 : vector<1x2x1x8xf32> to vector<2x2x8x8xf32>
    %120 = arith.addf %117, %119 : vector<2x2x8x8xf32>
    %cst_40 = arith.constant dense<0xFF800000> : vector<2x2x8xf32>
    %121 = vector.multi_reduction <maximumf>, %120, %cst_40 [3] : vector<2x2x8x8xf32> to vector<2x2x8xf32>
    %122 = vector.shape_cast %121 : vector<2x2x8xf32> to vector<2x2x8x1xf32>
    %123 = vector.broadcast %122 : vector<2x2x8x1xf32> to vector<2x2x8x8xf32>
    %124 = arith.subf %120, %123 : vector<2x2x8x8xf32>
    %125 = math.exp %124 : vector<2x2x8x8xf32>
    %cst_41 = arith.constant dense<0.000000e+00> : vector<2x2x8xf32>
    %126 = vector.multi_reduction <add>, %125, %cst_41 [3] : vector<2x2x8x8xf32> to vector<2x2x8xf32>
    %127 = vector.shape_cast %126 : vector<2x2x8xf32> to vector<2x2x8x1xf32>
    %128 = vector.broadcast %127 : vector<2x2x8x1xf32> to vector<2x2x8x8xf32>
    %129 = arith.divf %125, %128 : vector<2x2x8x8xf32>
    %130 = vector.shape_cast %129 : vector<2x2x8x8xf32> to vector<4x8x8xf32>
    %131 = arith.truncf %130 : vector<4x8x8xf32> to vector<4x8x8xbf16>
    "tpu.trace_start"() <{level = 10 : i32, message = "gqk,gkd->gqd"}> : () -> ()
    %cst_42 = arith.constant dense<0.000000e+00> : vector<4x8x16xf32>
    %132 = tpu.matmul %131, %115, %cst_42 {dimension_numbers = #tpu.dot_dimension_numbers<[2], [1], [1], [2], [0, 0, 0, 1, 1, 2], [0], [0]>} : vector<4x8x8xbf16>, vector<4x8x16xbf16>, vector<4x8x16xf32> -> vector<4x8x16xf32>
    "tpu.trace_stop"() : () -> ()
    %133 = vector.shape_cast %132 : vector<4x8x16xf32> to vector<2x16x16xf32>
    %134 = arith.truncf %133 : vector<2x16x16xf32> to vector<2x16x16xbf16>
    %135 = vector.extract_strided_slice %134 {offsets = [0, 0, 0], sizes = [1, 16, 16], strides = [1, 1, 1]} : vector<2x16x16xbf16> to vector<1x16x16xbf16>
    %136 = vector.shape_cast %135 : vector<1x16x16xbf16> to vector<16x16xbf16>
    %137 = vector.extract_strided_slice %134 {offsets = [1, 0, 0], sizes = [1, 16, 16], strides = [1, 1, 1]} : vector<2x16x16xbf16> to vector<1x16x16xbf16>
    %138 = vector.shape_cast %137 : vector<1x16x16xbf16> to vector<16x16xbf16>
    %139 = tpu.concatenate %136, %138 in 1 : vector<16x16xbf16>, vector<16x16xbf16> -> vector<16x32xbf16>
    %cst_43 = arith.constant dense<0.000000e+00> : vector<16x32xf32>
    %140 = tpu.matmul %139, %110, %cst_43 {dimension_numbers = #tpu.dot_dimension_numbers<[1], [0], [0], [1], [0, 0, 1, 1], [], []>} : vector<16x32xbf16>, vector<32x32xbf16>, vector<16x32xf32> -> vector<16x32xf32>
    %141 = arith.addf %140, %84 : vector<16x32xf32>
    %cst_44 = arith.constant dense<0.000000e+00> : vector<16xf32>
    %142 = vector.multi_reduction <add>, %141, %cst_44 [1] : vector<16x32xf32> to vector<16xf32>
    %143 = vector.shape_cast %142 : vector<16xf32> to vector<16x1xf32>
    %cst_45 = arith.constant 3.200000e+01 : f32
    %144 = vector.broadcast %cst_45 : f32 to vector<16x1xf32>
    %145 = arith.divf %143, %144 : vector<16x1xf32>
    %146 = vector.broadcast %145 : vector<16x1xf32> to vector<16x32xf32>
    %147 = arith.subf %141, %146 : vector<16x32xf32>
    %148 = arith.mulf %147, %147 : vector<16x32xf32>
    %cst_46 = arith.constant dense<0.000000e+00> : vector<16xf32>
    %149 = vector.multi_reduction <add>, %148, %cst_46 [1] : vector<16x32xf32> to vector<16xf32>
    %150 = vector.shape_cast %149 : vector<16xf32> to vector<16x1xf32>
    %cst_47 = arith.constant 3.200000e+01 : f32
    %151 = vector.broadcast %cst_47 : f32 to vector<16x1xf32>
    %152 = arith.divf %150, %151 : vector<16x1xf32>
    %153 = vector.broadcast %145 : vector<16x1xf32> to vector<16x32xf32>
    %154 = arith.subf %141, %153 : vector<16x32xf32>
    %cst_48 = arith.constant 9.99999997E-7 : f32
    %155 = vector.broadcast %cst_48 : f32 to vector<16x1xf32>
    %156 = arith.addf %152, %155 : vector<16x1xf32>
    %157 = math.rsqrt %156 : vector<16x1xf32>
    %158 = vector.broadcast %157 : vector<16x1xf32> to vector<16x32xf32>
    %159 = arith.mulf %154, %158 : vector<16x32xf32>
    %160 = vector.broadcast %111 : vector<1x32xf32> to vector<16x32xf32>
    %161 = arith.mulf %159, %160 : vector<16x32xf32>
    %162 = vector.broadcast %112 : vector<1x32xf32> to vector<16x32xf32>
    %163 = arith.addf %161, %162 : vector<16x32xf32>
    %c0_49 = arith.constant 0 : index
    %c0_50 = arith.constant 0 : index
    %c0_51 = arith.constant 0 : index
    %164 = vector.load %arg11[%c0_49, %c0_50, %c0_51] : memref<1x32x64xbf16, #tpu.memory_space<vmem>>, vector<1x32x64xbf16>
    %165 = vector.shape_cast %164 : vector<1x32x64xbf16> to vector<32x64xbf16>
    %c0_52 = arith.constant 0 : index
    %c0_53 = arith.constant 0 : index
    %c0_54 = arith.constant 0 : index
    %166 = vector.load %arg14[%c0_52, %c0_53, %c0_54] : memref<1x1x64xf32, #tpu.memory_space<vmem>>, vector<1x1x64xf32>
    %167 = vector.shape_cast %166 : vector<1x1x64xf32> to vector<1x64xf32>
    %c0_55 = arith.constant 0 : index
    %c0_56 = arith.constant 0 : index
    %c0_57 = arith.constant 0 : index
    %168 = vector.load %arg12[%c0_55, %c0_56, %c0_57] : memref<1x64x32xbf16, #tpu.memory_space<vmem>>, vector<1x64x32xbf16>
    %169 = vector.shape_cast %168 : vector<1x64x32xbf16> to vector<64x32xbf16>
    %170 = vector.extract_strided_slice %6 {offsets = [4, 0], sizes = [1, 32], strides = [1, 1]} : vector<7x32xf32> to vector<1x32xf32>
    %171 = vector.extract_strided_slice %6 {offsets = [5, 0], sizes = [1, 32], strides = [1, 1]} : vector<7x32xf32> to vector<1x32xf32>
    %172 = vector.extract_strided_slice %6 {offsets = [6, 0], sizes = [1, 32], strides = [1, 1]} : vector<7x32xf32> to vector<1x32xf32>
    %173 = arith.truncf %163 : vector<16x32xf32> to vector<16x32xbf16>
    %cst_58 = arith.constant dense<0.000000e+00> : vector<16x64xf32>
    %174 = tpu.matmul %173, %165, %cst_58 {dimension_numbers = #tpu.dot_dimension_numbers<[1], [0], [0], [1], [0, 0, 1, 1], [], []>} : vector<16x32xbf16>, vector<32x64xbf16>, vector<16x64xf32> -> vector<16x64xf32>
    %175 = vector.broadcast %167 : vector<1x64xf32> to vector<16x64xf32>
    %176 = arith.addf %174, %175 : vector<16x64xf32>
    %cst_59 = arith.constant 0.000000e+00 : f32
    %177 = vector.broadcast %cst_59 : f32 to vector<16x64xf32>
    %178 = arith.maximumf %176, %177 : vector<16x64xf32>
    %179 = arith.truncf %178 : vector<16x64xf32> to vector<16x64xbf16>
    %cst_60 = arith.constant dense<0.000000e+00> : vector<16x32xf32>
    %180 = tpu.matmul %179, %169, %cst_60 {dimension_numbers = #tpu.dot_dimension_numbers<[1], [0], [0], [1], [0, 0, 1, 1], [], []>} : vector<16x64xbf16>, vector<64x32xbf16>, vector<16x32xf32> -> vector<16x32xf32>
    %181 = vector.broadcast %170 : vector<1x32xf32> to vector<16x32xf32>
    %182 = arith.addf %180, %181 : vector<16x32xf32>
    %183 = arith.addf %182, %163 : vector<16x32xf32>
    %cst_61 = arith.constant dense<0.000000e+00> : vector<16xf32>
    %184 = vector.multi_reduction <add>, %183, %cst_61 [1] : vector<16x32xf32> to vector<16xf32>
    %185 = vector.shape_cast %184 : vector<16xf32> to vector<16x1xf32>
    %cst_62 = arith.constant 3.200000e+01 : f32
    %186 = vector.broadcast %cst_62 : f32 to vector<16x1xf32>
    %187 = arith.divf %185, %186 : vector<16x1xf32>
    %188 = vector.broadcast %187 : vector<16x1xf32> to vector<16x32xf32>
    %189 = arith.subf %183, %188 : vector<16x32xf32>
    %190 = arith.mulf %189, %189 : vector<16x32xf32>
    %cst_63 = arith.constant dense<0.000000e+00> : vector<16xf32>
    %191 = vector.multi_reduction <add>, %190, %cst_63 [1] : vector<16x32xf32> to vector<16xf32>
    %192 = vector.shape_cast %191 : vector<16xf32> to vector<16x1xf32>
    %cst_64 = arith.constant 3.200000e+01 : f32
    %193 = vector.broadcast %cst_64 : f32 to vector<16x1xf32>
    %194 = arith.divf %192, %193 : vector<16x1xf32>
    %195 = vector.broadcast %187 : vector<16x1xf32> to vector<16x32xf32>
    %196 = arith.subf %183, %195 : vector<16x32xf32>
    %cst_65 = arith.constant 9.99999997E-7 : f32
    %197 = vector.broadcast %cst_65 : f32 to vector<16x1xf32>
    %198 = arith.addf %194, %197 : vector<16x1xf32>
    %199 = math.rsqrt %198 : vector<16x1xf32>
    %200 = vector.broadcast %199 : vector<16x1xf32> to vector<16x32xf32>
    %201 = arith.mulf %196, %200 : vector<16x32xf32>
    %202 = vector.broadcast %171 : vector<1x32xf32> to vector<16x32xf32>
    %203 = arith.mulf %201, %202 : vector<16x32xf32>
    %204 = vector.broadcast %172 : vector<1x32xf32> to vector<16x32xf32>
    %205 = arith.addf %203, %204 : vector<16x32xf32>
    %c0_66 = arith.constant 0 : index
    %c0_67 = arith.constant 0 : index
    %206 = vector.load %arg15[%c0_66, %c0_67] : memref<16x32xf32, #tpu.memory_space<vmem>>, vector<16x32xf32>
    tpu.vector_store %arg15[%c0_66, %c0_67], %205 {strides = array<i32>} : memref<16x32xf32, #tpu.memory_space<vmem>>, vector<16x32xf32>,
    return
  }
  func.func @transform_0(%arg0: i32) -> (i32, i32) {
    %c0_i32 = arith.constant 0 : i32
    %c0_i32_0 = arith.constant 0 : i32
    %c0_i32_1 = arith.constant 0 : i32
    return %c0_i32, %c0_i32_0 : i32, i32
  }
  func.func @transform_1(%arg0: i32) -> (i32, i32) {
    %c0_i32 = arith.constant 0 : i32
    %c0_i32_0 = arith.constant 0 : i32
    %c0_i32_1 = arith.constant 0 : i32
    return %c0_i32, %c0_i32_0 : i32, i32
  }
  func.func @transform_2(%arg0: i32) -> (i32, i32, i32) {
    %c0_i32 = arith.constant 0 : i32
    %c0_i32_0 = arith.constant 0 : i32
    %c0_i32_1 = arith.constant 0 : i32
    %c0_i32_2 = arith.constant 0 : i32
    return %c0_i32, %c0_i32_0, %c0_i32_1 : i32, i32, i32
  }
  func.func @transform_3(%arg0: i32) -> (i32, i32) {
    %c0_i32 = arith.constant 0 : i32
    %c0_i32_0 = arith.constant 0 : i32
    %c0_i32_1 = arith.constant 0 : i32
    return %c0_i32, %c0_i32_0 : i32, i32
  }
  func.func @transform_4(%arg0: i32) -> (i32, i32) {
    %c0_i32 = arith.constant 0 : i32
    %c0_i32_0 = arith.constant 0 : i32
    %c0_i32_1 = arith.constant 0 : i32
    return %c0_i32, %c0_i32_0 : i32, i32
  }
  func.func @transform_5(%arg0: i32) -> (i32, i32, i32) {
    %c0_i32 = arith.constant 0 : i32
    %c0_i32_0 = arith.constant 0 : i32
    %c0_i32_1 = arith.constant 0 : i32
    return %arg0, %c0_i32, %c0_i32_0 : i32, i32, i32
  }
  func.func @transform_6(%arg0: i32) -> (i32, i32, i32) {
    %c0_i32 = arith.constant 0 : i32
    %c0_i32_0 = arith.constant 0 : i32
    %c0_i32_1 = arith.constant 0 : i32
    return %arg0, %c0_i32, %c0_i32_0 : i32, i32, i32
  }
  func.func @transform_7(%arg0: i32) -> (i32, i32, i32) {
    %c0_i32 = arith.constant 0 : i32
    %c0_i32_0 = arith.constant 0 : i32
    %c0_i32_1 = arith.constant 0 : i32
    return %arg0, %c0_i32, %c0_i32_0 : i32, i32, i32
  }
  func.func @transform_8(%arg0: i32) -> (i32, i32, i32) {
    %c0_i32 = arith.constant 0 : i32
    %c0_i32_0 = arith.constant 0 : i32
    %c0_i32_1 = arith.constant 0 : i32
    return %arg0, %c0_i32, %c0_i32_0 : i32, i32, i32
  }
  func.func @transform_9(%arg0: i32) -> (i32, i32, i32) {
    %c0_i32 = arith.constant 0 : i32
    %c0_i32_0 = arith.constant 0 : i32
    %c0_i32_1 = arith.constant 0 : i32
    return %arg0, %c0_i32, %c0_i32_0 : i32, i32, i32
  }
  func.func @transform_10(%arg0: i32) -> (i32, i32, i32) {
    %c0_i32 = arith.constant 0 : i32
    %c0_i32_0 = arith.constant 0 : i32
    %c0_i32_1 = arith.constant 0 : i32
    return %arg0, %c0_i32, %c0_i32_0 : i32, i32, i32
  }
  func.func @transform_11(%arg0: i32) -> (i32, i32, i32) {
    %c0_i32 = arith.constant 0 : i32
    %c0_i32_0 = arith.constant 0 : i32
    %c0_i32_1 = arith.constant 0 : i32
    return %arg0, %c0_i32, %c0_i32_0 : i32, i32, i32
  }
  func.func @transform_12(%arg0: i32) -> (i32, i32, i32) {
    %c0_i32 = arith.constant 0 : i32
    %c0_i32_0 = arith.constant 0 : i32
    %c0_i32_1 = arith.constant 0 : i32
    return %arg0, %c0_i32, %c0_i32_0 : i32, i32, i32
  }
  func.func @transform_13(%arg0: i32) -> (i32, i32, i32) {
    %c0_i32 = arith.constant 0 : i32
    %c0_i32_0 = arith.constant 0 : i32
    %c0_i32_1 = arith.constant 0 : i32
    return %arg0, %c0_i32, %c0_i32_0 : i32, i32, i32
  }
  func.func @transform_14(%arg0: i32) -> (i32, i32) {
    %c0_i32 = arith.constant 0 : i32
    %c0_i32_0 = arith.constant 0 : i32
    %c0_i32_1 = arith.constant 0 : i32
    return %c0_i32, %c0_i32_0 : i32, i32
  }
}

</mosaic_0001>

<llo_original>
// kernel: tpu_custom_call.1
$region0: #{tpu_custom_call.1}
  #allocation0 [shape = 'u32[]', space=smem, size = 0x4, offset = 0x4, fixed_abs, tag = 'smem constant byte address 0x4 - core index']
  #allocation1 [shape = 'u32[144,128]{1,0:T(1,128)}', space=vmem, size = 0x12000, scoped, tag = 'internal scratch']
  %s0 = inlined_call_operand.hbm [shape: f32[16,32], index: 0, kind: input, shape index: {}]
  %s1 = inlined_call_operand.hbm [shape: bf16[16,32], index: 1, kind: input, shape index: {}]
  %s2 = inlined_call_operand.hbm [shape: f32[2,8,8], index: 2, kind: input, shape index: {}]
  %s3 = inlined_call_operand.hbm [shape: f32[2,8], index: 3, kind: input, shape index: {}]
  %s4 = inlined_call_operand.hbm [shape: f32[2,32], index: 4, kind: input, shape index: {}]
  %s5 = inlined_call_operand.vmem [shape: bf16[2,32,96], index: 5, kind: input, shape index: {}]
  %s6 = inlined_call_operand.vmem [shape: bf16[2,32,32], index: 6, kind: input, shape index: {}]
  %s7 = inlined_call_operand.vmem [shape: bf16[2,32,32], index: 7, kind: input, shape index: {}]
  %s8 = inlined_call_operand.vmem [shape: bf16[2,32,64], index: 8, kind: input, shape index: {}]
  %s9 = inlined_call_operand.hbm [shape: bf16[2,32,32], index: 9, kind: input, shape index: {}]
  %s10 = inlined_call_operand.hbm [shape: bf16[2,32,64], index: 10, kind: input, shape index: {}]
  %s11 = inlined_call_operand.vmem [shape: bf16[2,64,32], index: 11, kind: input, shape index: {}]
  %s12 = inlined_call_operand.vmem [shape: f32[2,7,32], index: 12, kind: input, shape index: {}]
  %s13 = inlined_call_operand.vmem [shape: f32[2,1,64], index: 13, kind: input, shape index: {}]
  %s14 = inlined_call_operand.hbm [shape: f32[16,32], index: 14, kind: output, shape index: {}]
  %s15 = sld [smem:[#allocation0]]
  $region121: #{tpu_custom_call.1} parent=0
    _
  %s17 = ssub.s32 1, %s15
  %s18 = scalar_select 0, %s17, %s15
  $region1: #{tpu_custom_call.1} parent=0
    #allocation2 [shape = 'u8[8192]{0}', space=vmem, size = 0x2000, scoped, tag = 'input window, operand 0, single buffered']
    #allocation3 [shape = 's32[2]{0}', space=sflag, size = 0x8, scoped, tag = 'scoped memory for tpu_custom_call.1']
    #allocation4 [shape = 's32[2]{0}', space=sflag, size = 0x8, scoped, tag = 'scoped memory for tpu_custom_call.1']
    #allocation5 [shape = 'u8[4096]{0}', space=vmem, size = 0x1000, scoped, tag = 'input window, operand 1, single buffered']
    #allocation6 [shape = 's32[1]{0}', space=sflag, size = 0x4, scoped, tag = 'scoped memory for tpu_custom_call.1']
    #allocation7 [shape = 'u8[8192]{0}', space=vmem, size = 0x2000, scoped, tag = 'input window, operand 2, single buffered']
    #allocation8 [shape = 'u8[1024]{0}', space=vmem, size = 0x400, scoped, tag = 'input window, operand 3, single buffered']
    #allocation9 [shape = 's32[1]{0}', space=sflag, size = 0x4, scoped, tag = 'scoped memory for tpu_custom_call.1']
    #allocation10 [shape = 'u8[1024]{0}', space=vmem, size = 0x400, scoped, tag = 'input window, operand 4, single buffered']
    #allocation11 [shape = 'u8[16384]{0}', space=vmem, size = 0x4000, scoped, tag = 'input window, operand 9']
    #allocation12 [shape = 's32[2]{0}', space=sflag, size = 0x8, scoped, tag = 'scoped memory for tpu_custom_call.1']
    #allocation13 [shape = 'u8[16384]{0}', space=vmem, size = 0x4000, scoped, tag = 'input window, operand 10']
    #allocation14 [shape = 'u8[8192]{0}', space=vmem, size = 0x2000, scoped, tag = 'output window, operand 0, single buffered']
    %19 = vsyncpa [#allocation3], 0
    %20 = vsyncpa [#allocation6], 0
    %21 = vsyncpa [#allocation9], 0
    %22 = vsyncpa [#allocation12], 0
    %s23 = scalar_lea.sflag [#allocation12], 1
    %24 = vsyncpa %s23, 0
    %25 = vsyncpa [#allocation4], 0
    loop: start=0, step=1, limit=4
    $region2: #{tpu_custom_call.1} parent=1 // loop_pre_header
      _
    $region3: #{tpu_custom_call.1} parent=1 // loop_header
      %s27 = sphi 0, %s31
      %p28 = scmp.ge.s32.totalorder %s27, 4
      %s35 = sphi 0, %s35
      %s37 = sphi 0, %s35
      %s38 = sphi 0, %s37
      %s52 = sphi 0, %s38
      %s56 = sphi 0, %s56
      %s58 = sphi 0, %s56
      %s59 = sphi 0, %s58
      %s73 = sphi 0, %s59
      %s77 = sphi 0, %s77
      %s79 = sphi 0, %s77
      %s80 = sphi 0, %s79
      %s94 = sphi 0, %s80
      %s98 = sphi 0, %s98
      %s100 = sphi 0, %s98
      %s101 = sphi 0, %s100
      %s115 = sphi 0, %s101
      %s119 = sphi 0, %s119
      %s121 = sphi 0, %s119
      %s122 = sphi 0, %s121
      %s136 = sphi 0, %s122
      %s142 = sphi 0, %s144
      %s145 = sphi 0, %s142
      %s146 = sphi 0, %s145
      %s162 = sphi 0, %s146
      %s168 = sphi 0, %s170
      %s171 = sphi 0, %s168
      %s172 = sphi 0, %s171
      %s188 = sphi 0, %s172
      %s194 = sphi 0, %s196
      %s197 = sphi 0, %s194
      %s198 = sphi 0, %s197
      %s214 = sphi 0, %s198
      %s220 = sphi 0, %s222
      %s223 = sphi 0, %s220
      %s224 = sphi 0, %s223
      %s240 = sphi 0, %s224
      %s246 = sphi 0, %s248
      %s249 = sphi 0, %s246
      %s250 = sphi 0, %s249
      %s266 = sphi 0, %s250
      %s272 = sphi 0, %s274
      %s275 = sphi 0, %s272
      %s276 = sphi 0, %s275
      %s292 = sphi 0, %s276
      %s298 = sphi 0, %s300
      %s301 = sphi 0, %s298
      %s302 = sphi 0, %s301
      %s318 = sphi 0, %s302
      %s324 = sphi 0, %s326
      %s327 = sphi 0, %s324
      %s328 = sphi 0, %s327
      %s344 = sphi 0, %s328
      %s350 = sphi 0, %s352
      %s353 = sphi 0, %s350
      %s354 = sphi 0, %s353
      %s370 = sphi 0, %s354
      %s374 = sphi 0, %s374
      %s376 = sphi 0, %s374
      %s377 = sphi 0, %s376
      %s391 = sphi 0, %s377
    $region4: #{tpu_custom_call.1} parent=1 // loop_header_branch
      %30 = sbr.rel (%p28) target = $region8
    $region5: #{tpu_custom_call.1} parent=1 // loop_body
      %s32 = ssub.s32 %s27, 1
      %s33 = ssub.s32 %s27, 2
      %s34 = sadd.s32 %s27, 1
      %s36 = sadd.s32 %s35, 1
      %p39 = scmp.eq.s32.totalorder %s27, 1
      %p40 = scmp.ne.s32.totalorder %s35, %s37
      %p41 = scmp.eq.s32.totalorder %s27, 0
      %p42 = por %p40, %p41
      %p43 = scmp.ne.s32.totalorder %s35, %s37
      %p44 = scmp.eq.s32.totalorder %s32, 1
      %p45 = por %p43, %p44
      %p46 = scmp.ne.s32.totalorder %s37, %s38
      %p47 = scmp.eq.s32.totalorder %s32, 0
      %p48 = por %p46, %p47
      %p49 = scmp.ne.s32.totalorder %s37, %s38
      %p50 = scmp.eq.s32.totalorder %s33, 1
      %p51 = por %p49, %p50
      %p53 = scmp.ne.s32.totalorder %s38, %s52
      %p54 = scmp.eq.s32.totalorder %s33, 0
      %p55 = por %p53, %p54
      %s57 = sadd.s32 %s56, 1
      %p60 = scmp.eq.s32.totalorder %s27, 1
      %p61 = scmp.ne.s32.totalorder %s56, %s58
      %p62 = scmp.eq.s32.totalorder %s27, 0
      %p63 = por %p61, %p62
      %p64 = scmp.ne.s32.totalorder %s56, %s58
      %p65 = scmp.eq.s32.totalorder %s32, 1
      %p66 = por %p64, %p65
      %p67 = scmp.ne.s32.totalorder %s58, %s59
      %p68 = scmp.eq.s32.totalorder %s32, 0
      %p69 = por %p67, %p68
      %p70 = scmp.ne.s32.totalorder %s58, %s59
      %p71 = scmp.eq.s32.totalorder %s33, 1
      %p72 = por %p70, %p71
      %p74 = scmp.ne.s32.totalorder %s59, %s73
      %p75 = scmp.eq.s32.totalorder %s33, 0
      %p76 = por %p74, %p75
      %s78 = sadd.s32 %s77, 1
      %p81 = scmp.eq.s32.totalorder %s27, 1
      %p82 = scmp.ne.s32.totalorder %s77, %s79
      %p83 = scmp.eq.s32.totalorder %s27, 0
      %p84 = por %p82, %p83
      %p85 = scmp.ne.s32.totalorder %s77, %s79
      %p86 = scmp.eq.s32.totalorder %s32, 1
      %p87 = por %p85, %p86
      %p88 = scmp.ne.s32.totalorder %s79, %s80
      %p89 = scmp.eq.s32.totalorder %s32, 0
      %p90 = por %p88, %p89
      %p91 = scmp.ne.s32.totalorder %s79, %s80
      %p92 = scmp.eq.s32.totalorder %s33, 1
      %p93 = por %p91, %p92
      %p95 = scmp.ne.s32.totalorder %s80, %s94
      %p96 = scmp.eq.s32.totalorder %s33, 0
      %p97 = por %p95, %p96
      %s99 = sadd.s32 %s98, 1
      %p102 = scmp.eq.s32.totalorder %s27, 1
      %p103 = scmp.ne.s32.totalorder %s98, %s100
      %p104 = scmp.eq.s32.totalorder %s27, 0
      %p105 = por %p103, %p104
      %p106 = scmp.ne.s32.totalorder %s98, %s100
      %p107 = scmp.eq.s32.totalorder %s32, 1
      %p108 = por %p106, %p107
      %p109 = scmp.ne.s32.totalorder %s100, %s101
      %p110 = scmp.eq.s32.totalorder %s32, 0
      %p111 = por %p109, %p110
      %p112 = scmp.ne.s32.totalorder %s100, %s101
      %p113 = scmp.eq.s32.totalorder %s33, 1
      %p114 = por %p112, %p113
      %p116 = scmp.ne.s32.totalorder %s101, %s115
      %p117 = scmp.eq.s32.totalorder %s33, 0
      %p118 = por %p116, %p117
      %s120 = sadd.s32 %s119, 1
      %p123 = scmp.eq.s32.totalorder %s27, 1
      %p124 = scmp.ne.s32.totalorder %s119, %s121
      %p125 = scmp.eq.s32.totalorder %s27, 0
      %p126 = por %p124, %p125
      %p127 = scmp.ne.s32.totalorder %s119, %s121
      %p128 = scmp.eq.s32.totalorder %s32, 1
      %p129 = por %p127, %p128
      %p130 = scmp.ne.s32.totalorder %s121, %s122
      %p131 = scmp.eq.s32.totalorder %s32, 0
      %p132 = por %p130, %p131
      %p133 = scmp.ne.s32.totalorder %s121, %s122
      %p134 = scmp.eq.s32.totalorder %s33, 1
      %p135 = por %p133, %p134
      %p137 = scmp.ne.s32.totalorder %s122, %s136
      %p138 = scmp.eq.s32.totalorder %s33, 0
      %p139 = por %p137, %p138
      %s140 = ssub.s32 %s27, %s34
      %p141 = scmp.eq.s32.totalorder %s140, 0
      %s143 = sadd.s32 %s142, 1
      %s144 = scalar_select %p141, %s142, %s143
      %p147 = pneg %p141
      %p148 = scmp.eq.s32.totalorder %s27, 1
      %p149 = por %p147, %p148
      %p150 = scmp.ne.s32.totalorder %s142, %s145
      %p151 = scmp.eq.s32.totalorder %s27, 0
      %p152 = por %p150, %p151
      %p153 = scmp.ne.s32.totalorder %s142, %s145
      %p154 = scmp.eq.s32.totalorder %s32, 1
      %p155 = por %p153, %p154
      %p156 = scmp.ne.s32.totalorder %s145, %s146
      %p157 = scmp.eq.s32.totalorder %s32, 0
      %p158 = por %p156, %p157
      %p159 = scmp.ne.s32.totalorder %s145, %s146
      %p160 = scmp.eq.s32.totalorder %s33, 1
      %p161 = por %p159, %p160
      %p163 = scmp.ne.s32.totalorder %s146, %s162
      %p164 = scmp.eq.s32.totalorder %s33, 0
      %p165 = por %p163, %p164
      %s166 = ssub.s32 %s27, %s34
      %p167 = scmp.eq.s32.totalorder %s166, 0
      %s169 = sadd.s32 %s168, 1
      %s170 = scalar_select %p167, %s168, %s169
      %p173 = pneg %p167
      %p174 = scmp.eq.s32.totalorder %s27, 1
      %p175 = por %p173, %p174
      %p176 = scmp.ne.s32.totalorder %s168, %s171
      %p177 = scmp.eq.s32.totalorder %s27, 0
      %p178 = por %p176, %p177
      %p179 = scmp.ne.s32.totalorder %s168, %s171
      %p180 = scmp.eq.s32.totalorder %s32, 1
      %p181 = por %p179, %p180
      %p182 = scmp.ne.s32.totalorder %s171, %s172
      %p183 = scmp.eq.s32.totalorder %s32, 0
      %p184 = por %p182, %p183
      %p185 = scmp.ne.s32.totalorder %s171, %s172
      %p186 = scmp.eq.s32.totalorder %s33, 1
      %p187 = por %p185, %p186
      %p189 = scmp.ne.s32.totalorder %s172, %s188
      %p190 = scmp.eq.s32.totalorder %s33, 0
      %p191 = por %p189, %p190
      %s192 = ssub.s32 %s27, %s34
      %p193 = scmp.eq.s32.totalorder %s192, 0
      %s195 = sadd.s32 %s194, 1
      %s196 = scalar_select %p193, %s194, %s195
      %p199 = pneg %p193
      %p200 = scmp.eq.s32.totalorder %s27, 1
      %p201 = por %p199, %p200
      %p202 = scmp.ne.s32.totalorder %s194, %s197
      %p203 = scmp.eq.s32.totalorder %s27, 0
      %p204 = por %p202, %p203
      %p205 = scmp.ne.s32.totalorder %s194, %s197
      %p206 = scmp.eq.s32.totalorder %s32, 1
      %p207 = por %p205, %p206
      %p208 = scmp.ne.s32.totalorder %s197, %s198
      %p209 = scmp.eq.s32.totalorder %s32, 0
      %p210 = por %p208, %p209
      %p211 = scmp.ne.s32.totalorder %s197, %s198
      %p212 = scmp.eq.s32.totalorder %s33, 1
      %p213 = por %p211, %p212
      %p215 = scmp.ne.s32.totalorder %s198, %s214
      %p216 = scmp.eq.s32.totalorder %s33, 0
      %p217 = por %p215, %p216
      %s218 = ssub.s32 %s27, %s34
      %p219 = scmp.eq.s32.totalorder %s218, 0
      %s221 = sadd.s32 %s220, 1
      %s222 = scalar_select %p219, %s220, %s221
      %p225 = pneg %p219
      %p226 = scmp.eq.s32.totalorder %s27, 1
      %p227 = por %p225, %p226
      %p228 = scmp.ne.s32.totalorder %s220, %s223
      %p229 = scmp.eq.s32.totalorder %s27, 0
      %p230 = por %p228, %p229
      %p231 = scmp.ne.s32.totalorder %s220, %s223
      %p232 = scmp.eq.s32.totalorder %s32, 1
      %p233 = por %p231, %p232
      %p234 = scmp.ne.s32.totalorder %s223, %s224
      %p235 = scmp.eq.s32.totalorder %s32, 0
      %p236 = por %p234, %p235
      %p237 = scmp.ne.s32.totalorder %s223, %s224
      %p238 = scmp.eq.s32.totalorder %s33, 1
      %p239 = por %p237, %p238
      %p241 = scmp.ne.s32.totalorder %s224, %s240
      %p242 = scmp.eq.s32.totalorder %s33, 0
      %p243 = por %p241, %p242
      %s244 = ssub.s32 %s27, %s34
      %p245 = scmp.eq.s32.totalorder %s244, 0
      %s247 = sadd.s32 %s246, 1
      %s248 = scalar_select %p245, %s246, %s247
      %p251 = pneg %p245
      %p252 = scmp.eq.s32.totalorder %s27, 1
      %p253 = por %p251, %p252
      %p254 = scmp.ne.s32.totalorder %s246, %s249
      %p255 = scmp.eq.s32.totalorder %s27, 0
      %p256 = por %p254, %p255
      %p257 = scmp.ne.s32.totalorder %s246, %s249
      %p258 = scmp.eq.s32.totalorder %s32, 1
      %p259 = por %p257, %p258
      %p260 = scmp.ne.s32.totalorder %s249, %s250
      %p261 = scmp.eq.s32.totalorder %s32, 0
      %p262 = por %p260, %p261
      %p263 = scmp.ne.s32.totalorder %s249, %s250
      %p264 = scmp.eq.s32.totalorder %s33, 1
      %p265 = por %p263, %p264
      %p267 = scmp.ne.s32.totalorder %s250, %s266
      %p268 = scmp.eq.s32.totalorder %s33, 0
      %p269 = por %p267, %p268
      %s270 = ssub.s32 %s27, %s34
      %p271 = scmp.eq.s32.totalorder %s270, 0
      %s273 = sadd.s32 %s272, 1
      %s274 = scalar_select %p271, %s272, %s273
      %p277 = pneg %p271
      %p278 = scmp.eq.s32.totalorder %s27, 1
      %p279 = por %p277, %p278
      %p280 = scmp.ne.s32.totalorder %s272, %s275
      %p281 = scmp.eq.s32.totalorder %s27, 0
      %p282 = por %p280, %p281
      %p283 = scmp.ne.s32.totalorder %s272, %s275
      %p284 = scmp.eq.s32.totalorder %s32, 1
      %p285 = por %p283, %p284
      %p286 = scmp.ne.s32.totalorder %s275, %s276
      %p287 = scmp.eq.s32.totalorder %s32, 0
      %p288 = por %p286, %p287
      %p289 = scmp.ne.s32.totalorder %s275, %s276
      %p290 = scmp.eq.s32.totalorder %s33, 1
      %p291 = por %p289, %p290
      %p293 = scmp.ne.s32.totalorder %s276, %s292
      %p294 = scmp.eq.s32.totalorder %s33, 0
      %p295 = por %p293, %p294
      %s296 = ssub.s32 %s27, %s34
      %p297 = scmp.eq.s32.totalorder %s296, 0
      %s299 = sadd.s32 %s298, 1
      %s300 = scalar_select %p297, %s298, %s299
      %p303 = pneg %p297
      %p304 = scmp.eq.s32.totalorder %s27, 1
      %p305 = por %p303, %p304
      %p306 = scmp.ne.s32.totalorder %s298, %s301
      %p307 = scmp.eq.s32.totalorder %s27, 0
      %p308 = por %p306, %p307
      %p309 = scmp.ne.s32.totalorder %s298, %s301
      %p310 = scmp.eq.s32.totalorder %s32, 1
      %p311 = por %p309, %p310
      %p312 = scmp.ne.s32.totalorder %s301, %s302
      %p313 = scmp.eq.s32.totalorder %s32, 0
      %p314 = por %p312, %p313
      %p315 = scmp.ne.s32.totalorder %s301, %s302
      %p316 = scmp.eq.s32.totalorder %s33, 1
      %p317 = por %p315, %p316
      %p319 = scmp.ne.s32.totalorder %s302, %s318
      %p320 = scmp.eq.s32.totalorder %s33, 0
      %p321 = por %p319, %p320
      %s322 = ssub.s32 %s27, %s34
      %p323 = scmp.eq.s32.totalorder %s322, 0
      %s325 = sadd.s32 %s324, 1
      %s326 = scalar_select %p323, %s324, %s325
      %p329 = pneg %p323
      %p330 = scmp.eq.s32.totalorder %s27, 1
      %p331 = por %p329, %p330
      %p332 = scmp.ne.s32.totalorder %s324, %s327
      %p333 = scmp.eq.s32.totalorder %s27, 0
      %p334 = por %p332, %p333
      %p335 = scmp.ne.s32.totalorder %s324, %s327
      %p336 = scmp.eq.s32.totalorder %s32, 1
      %p337 = por %p335, %p336
      %p338 = scmp.ne.s32.totalorder %s327, %s328
      %p339 = scmp.eq.s32.totalorder %s32, 0
      %p340 = por %p338, %p339
      %p341 = scmp.ne.s32.totalorder %s327, %s328
      %p342 = scmp.eq.s32.totalorder %s33, 1
      %p343 = por %p341, %p342
      %p345 = scmp.ne.s32.totalorder %s328, %s344
      %p346 = scmp.eq.s32.totalorder %s33, 0
      %p347 = por %p345, %p346
      %s348 = ssub.s32 %s27, %s34
      %p349 = scmp.eq.s32.totalorder %s348, 0
      %s351 = sadd.s32 %s350, 1
      %s352 = scalar_select %p349, %s350, %s351
      %p355 = pneg %p349
      %p356 = scmp.eq.s32.totalorder %s27, 1
      %p357 = por %p355, %p356
      %p358 = scmp.ne.s32.totalorder %s350, %s353
      %p359 = scmp.eq.s32.totalorder %s27, 0
      %p360 = por %p358, %p359
      %p361 = scmp.ne.s32.totalorder %s350, %s353
      %p362 = scmp.eq.s32.totalorder %s32, 1
      %p363 = por %p361, %p362
      %p364 = scmp.ne.s32.totalorder %s353, %s354
      %p365 = scmp.eq.s32.totalorder %s32, 0
      %p366 = por %p364, %p365
      %p367 = scmp.ne.s32.totalorder %s353, %s354
      %p368 = scmp.eq.s32.totalorder %s33, 1
      %p369 = por %p367, %p368
      %p371 = scmp.ne.s32.totalorder %s354, %s370
      %p372 = scmp.eq.s32.totalorder %s33, 0
      %p373 = por %p371, %p372
      %s375 = sadd.s32 %s374, 1
      %p378 = scmp.eq.s32.totalorder %s27, 1
      %p379 = scmp.ne.s32.totalorder %s374, %s376
      %p380 = scmp.eq.s32.totalorder %s27, 0
      %p381 = por %p379, %p380
      %p382 = scmp.ne.s32.totalorder %s374, %s376
      %p383 = scmp.eq.s32.totalorder %s32, 1
      %p384 = por %p382, %p383
      %p385 = scmp.ne.s32.totalorder %s376, %s377
      %p386 = scmp.eq.s32.totalorder %s32, 0
      %p387 = por %p385, %p386
      %p388 = scmp.ne.s32.totalorder %s376, %s377
      %p389 = scmp.eq.s32.totalorder %s33, 1
      %p390 = por %p388, %p389
      %p392 = scmp.ne.s32.totalorder %s377, %s391
      %p393 = scmp.eq.s32.totalorder %s33, 0
      %p394 = por %p392, %p393
      %p395 = scmp.le.s32.totalorder 1, %s27
      %p396 = scmp.lt.s32.totalorder %s27, 3
      %p397 = pnand %p395, %p396
      %p398 = pneg %p397
      // Predicated region
      $region9: #{tpu_custom_call.1} parent=5 // pred_check
        _
      $region10: #{tpu_custom_call.1} parent=5 // pred_check_branch
        %400 = sbr.rel (%p397) target = $region12
      $region11: #{tpu_custom_call.1} parent=5 // pred_region
        %s401 = ssub.s32 %s27, 1
        // Predicated region
        $region13: #{tpu_custom_call.1} parent=11 // pred_check
          %p402 = pneg %p48
        $region14: #{tpu_custom_call.1} parent=11 // pred_check_branch
          %404 = sbr.rel (%p402) target = $region16
        $region15: #{tpu_custom_call.1} parent=11 // pred_region
          %s406 = ssub.s32 256, 256
          %407 = vsyncadd [#allocation3], %s406
          %s408 = sshll.u32 [#allocation2], 4
          %s409 = int_to_ptr.vmem [resolvable:$true] %s408
          %414 = dma.hbm_to_vmem [thread:$0]  %s0, 256, %s409, [#allocation3], 128, 128, 8
        $region16: #{tpu_custom_call.1} parent=11 // pred_fallthru
          _
        // Predicated region
        $region17: #{tpu_custom_call.1} parent=11 // pred_check
          %p415 = pneg %p69
        $region18: #{tpu_custom_call.1} parent=11 // pred_check_branch
          %417 = sbr.rel (%p415) target = $region20
        $region19: #{tpu_custom_call.1} parent=11 // pred_region
          %s419 = ssub.s32 128, 128
          %420 = vsyncadd [#allocation6], %s419
          %s421 = sshll.u32 [#allocation5], 4
          %s422 = int_to_ptr.vmem [resolvable:$true] %s421
          %427 = dma.hbm_to_vmem [thread:$0]  %s1, 128, %s422, [#allocation6], 64, 64, 4
        $region20: #{tpu_custom_call.1} parent=11 // pred_fallthru
          _
        // Predicated region
        $region21: #{tpu_custom_call.1} parent=11 // pred_check
          %p428 = pneg %p90
        $region22: #{tpu_custom_call.1} parent=11 // pred_check_branch
          %430 = sbr.rel (%p428) target = $region24
        $region23: #{tpu_custom_call.1} parent=11 // pred_region
          %s432 = ssub.s32 256, 256
          %433 = vsyncadd [#allocation6], %s432
          %s434 = sshll.u32 [#allocation7], 4
          %s435 = int_to_ptr.vmem [resolvable:$true] %s434
          %440 = dma.hbm_to_vmem [thread:$0]  %s2, 256, %s435, [#allocation6], 128, 128, 8
        $region24: #{tpu_custom_call.1} parent=11 // pred_fallthru
          _
        // Predicated region
        $region25: #{tpu_custom_call.1} parent=11 // pred_check
          %p441 = pneg %p111
        $region26: #{tpu_custom_call.1} parent=11 // pred_check_branch
          %443 = sbr.rel (%p441) target = $region28
        $region27: #{tpu_custom_call.1} parent=11 // pred_region
          %s445 = ssub.s32 32, 32
          %446 = vsyncadd [#allocation9], %s445
          %s448 = sshll.u32 [#allocation8], 4
          %s449 = int_to_ptr.vmem [resolvable:$true] %s448
          %451 = dma.hbm_to_vmem [thread:$0]  %s3, 32, %s449, [#allocation9]
        $region28: #{tpu_custom_call.1} parent=11 // pred_fallthru
          _
        // Predicated region
        $region29: #{tpu_custom_call.1} parent=11 // pred_check
          %p452 = pneg %p132
        $region30: #{tpu_custom_call.1} parent=11 // pred_check_branch
          %454 = sbr.rel (%p452) target = $region32
        $region31: #{tpu_custom_call.1} parent=11 // pred_region
          %s456 = ssub.s32 32, 32
          %457 = vsyncadd [#allocation9], %s456
          %s459 = sshll.u32 [#allocation10], 4
          %s460 = int_to_ptr.vmem [resolvable:$true] %s459
          %462 = dma.hbm_to_vmem [thread:$0]  %s4, 32, %s460, [#allocation9]
        $region32: #{tpu_custom_call.1} parent=11 // pred_fallthru
          _
      $region12: #{tpu_custom_call.1} parent=5 // pred_fallthru
        _
      %p463 = scmp.lt.s32.totalorder %s27, 2
      // Predicated region
      $region33: #{tpu_custom_call.1} parent=5 // pred_check
        %p464 = pneg %p463
      $region34: #{tpu_custom_call.1} parent=5 // pred_check_branch
        %466 = sbr.rel (%p464) target = $region36
      $region35: #{tpu_custom_call.1} parent=5 // pred_region
        // Predicated region
        $region37: #{tpu_custom_call.1} parent=35 // pred_check
          %p467 = pneg %p152
        $region38: #{tpu_custom_call.1} parent=35 // pred_check_branch
          %469 = sbr.rel (%p467) target = $region40
        $region39: #{tpu_custom_call.1} parent=35 // pred_region
          %p470 = scmp.lt.s32.totalorder %s27, 1
          %s471 = scalar_select %p470, %s27, 1
          %s472 = smul.addr %s471, 4
          %s473 = smul.addr %s472, 4
          %s474 = scalar_lea.vmem %s5, %s473
        $region40: #{tpu_custom_call.1} parent=35 // pred_fallthru
          _
        // Predicated region
        $region41: #{tpu_custom_call.1} parent=35 // pred_check
          %p475 = pneg %p178
        $region42: #{tpu_custom_call.1} parent=35 // pred_check_branch
          %477 = sbr.rel (%p475) target = $region44
        $region43: #{tpu_custom_call.1} parent=35 // pred_region
          %p478 = scmp.lt.s32.totalorder %s27, 1
          %s479 = scalar_select %p478, %s27, 1
          %s480 = smul.addr %s479, 4
          %s481 = smul.addr %s480, 4
          %s482 = scalar_lea.vmem %s6, %s481
        $region44: #{tpu_custom_call.1} parent=35 // pred_fallthru
          _
        // Predicated region
        $region45: #{tpu_custom_call.1} parent=35 // pred_check
          %p483 = pneg %p204
        $region46: #{tpu_custom_call.1} parent=35 // pred_check_branch
          %485 = sbr.rel (%p483) target = $region48
        $region47: #{tpu_custom_call.1} parent=35 // pred_region
          %p486 = scmp.lt.s32.totalorder %s27, 1
          %s487 = scalar_select %p486, %s27, 1
          %s488 = smul.addr %s487, 4
          %s489 = smul.addr %s488, 4
          %s490 = scalar_lea.vmem %s7, %s489
        $region48: #{tpu_custom_call.1} parent=35 // pred_fallthru
          _
        // Predicated region
        $region49: #{tpu_custom_call.1} parent=35 // pred_check
          %p491 = pneg %p230
        $region50: #{tpu_custom_call.1} parent=35 // pred_check_branch
          %493 = sbr.rel (%p491) target = $region52
        $region51: #{tpu_custom_call.1} parent=35 // pred_region
          %p494 = scmp.lt.s32.totalorder %s27, 1
          %s495 = scalar_select %p494, %s27, 1
          %s496 = smul.addr %s495, 4
          %s497 = smul.addr %s496, 4
          %s498 = scalar_lea.vmem %s8, %s497
        $region52: #{tpu_custom_call.1} parent=35 // pred_fallthru
          _
        // Predicated region
        $region53: #{tpu_custom_call.1} parent=35 // pred_check
          %p499 = pneg %p256
        $region54: #{tpu_custom_call.1} parent=35 // pred_check_branch
          %501 = sbr.rel (%p499) target = $region56
        $region55: #{tpu_custom_call.1} parent=35 // pred_region
          %s502 = sand.u32 %s27, 1
          %s503 = scalar_lea.sflag [#allocation12], %s502
          %s504 = sand.u32 %s246, 1
          %s505 = smul.addr %s504, 16
          %s506 = scalar_lea.vmem [#allocation11], %s505
          %s508 = ssub.s32 256, 256
          %509 = vsyncadd %s503, %s508
          %s510 = smul.addr %s27, 4
          %s511 = smul.addr %s510, 64
          %s512 = scalar_lea.hbm %s9, %s511
          %s513 = sshll.u32 %s506, 4
          %s514 = int_to_ptr.vmem [resolvable:$true] %s513
          %519 = dma.hbm_to_vmem [thread:$0]  %s512, 256, %s514, %s503, 64, 64, 4
        $region56: #{tpu_custom_call.1} parent=35 // pred_fallthru
          _
        // Predicated region
        $region57: #{tpu_custom_call.1} parent=35 // pred_check
          %p520 = pneg %p282
        $region58: #{tpu_custom_call.1} parent=35 // pred_check_branch
          %522 = sbr.rel (%p520) target = $region60
        $region59: #{tpu_custom_call.1} parent=35 // pred_region
          %s523 = sand.u32 %s27, 1
          %s524 = scalar_lea.sflag [#allocation12], %s523
          %s525 = sand.u32 %s272, 1
          %s526 = smul.addr %s525, 16
          %s527 = scalar_lea.vmem [#allocation13], %s526
          %s529 = ssub.s32 256, 256
          %530 = vsyncadd %s524, %s529
          %s531 = smul.addr %s27, 4
          %s532 = smul.addr %s531, 64
          %s533 = scalar_lea.hbm %s10, %s532
          %s534 = sshll.u32 %s527, 4
          %s535 = int_to_ptr.vmem [resolvable:$true] %s534
          %540 = dma.hbm_to_vmem [thread:$0]  %s533, 256, %s535, %s524, 64, 64, 4
        $region60: #{tpu_custom_call.1} parent=35 // pred_fallthru
          _
        // Predicated region
        $region61: #{tpu_custom_call.1} parent=35 // pred_check
          %p541 = pneg %p308
        $region62: #{tpu_custom_call.1} parent=35 // pred_check_branch
          %543 = sbr.rel (%p541) target = $region64
        $region63: #{tpu_custom_call.1} parent=35 // pred_region
          %p544 = scmp.lt.s32.totalorder %s27, 1
          %s545 = scalar_select %p544, %s27, 1
          %s546 = smul.addr %s545, 8
          %s547 = smul.addr %s546, 4
          %s548 = scalar_lea.vmem %s11, %s547
        $region64: #{tpu_custom_call.1} parent=35 // pred_fallthru
          _
        // Predicated region
        $region65: #{tpu_custom_call.1} parent=35 // pred_check
          %p549 = pneg %p334
        $region66: #{tpu_custom_call.1} parent=35 // pred_check_branch
          %551 = sbr.rel (%p549) target = $region68
        $region67: #{tpu_custom_call.1} parent=35 // pred_region
          %p552 = scmp.lt.s32.totalorder %s27, 1
          %s553 = scalar_select %p552, %s27, 1
          %s554 = smul.addr %s553, 8
          %s555 = scalar_lea.vmem %s12, %s554
        $region68: #{tpu_custom_call.1} parent=35 // pred_fallthru
          _
        // Predicated region
        $region69: #{tpu_custom_call.1} parent=35 // pred_check
          %p556 = pneg %p360
        $region70: #{tpu_custom_call.1} parent=35 // pred_check_branch
          %558 = sbr.rel (%p556) target = $region72
        $region71: #{tpu_custom_call.1} parent=35 // pred_region
          %p559 = scmp.lt.s32.totalorder %s27, 1
          %s560 = scalar_select %p559, %s27, 1
          %s561 = scalar_lea.vmem %s13, %s560
        $region72: #{tpu_custom_call.1} parent=35 // pred_fallthru
          _
      $region36: #{tpu_custom_call.1} parent=5 // pred_fallthru
        _
      %p562 = scmp.le.s32.totalorder 1, %s27
      %p563 = scmp.lt.s32.totalorder %s27, 3
      %p564 = pnand %p562, %p563
      %p565 = pneg %p564
      // Predicated region
      $region73: #{tpu_custom_call.1} parent=5 // pred_check
        _
      $region74: #{tpu_custom_call.1} parent=5 // pred_check_branch
        %567 = sbr.rel (%p564) target = $region76
      $region75: #{tpu_custom_call.1} parent=5 // pred_region
        %s568 = ssub.s32 %s27, 1
        // Predicated region
        $region77: #{tpu_custom_call.1} parent=75 // pred_check
          %p569 = pneg %p48
        $region78: #{tpu_custom_call.1} parent=75 // pred_check_branch
          %571 = sbr.rel (%p569) target = $region80
        $region79: #{tpu_custom_call.1} parent=75 // pred_region
          %572 = dma.done [#allocation3], 256
        $region80: #{tpu_custom_call.1} parent=75 // pred_fallthru
          _
        // Predicated region
        $region81: #{tpu_custom_call.1} parent=75 // pred_check
          %p573 = pneg %p69
        $region82: #{tpu_custom_call.1} parent=75 // pred_check_branch
          %575 = sbr.rel (%p573) target = $region84
        $region83: #{tpu_custom_call.1} parent=75 // pred_region
          %576 = dma.done [#allocation6], 128
        $region84: #{tpu_custom_call.1} parent=75 // pred_fallthru
          _
        // Predicated region
        $region85: #{tpu_custom_call.1} parent=75 // pred_check
          %p577 = pneg %p90
        $region86: #{tpu_custom_call.1} parent=75 // pred_check_branch
          %579 = sbr.rel (%p577) target = $region88
        $region87: #{tpu_custom_call.1} parent=75 // pred_region
          %580 = dma.done [#allocation6], 256
        $region88: #{tpu_custom_call.1} parent=75 // pred_fallthru
          _
        // Predicated region
        $region89: #{tpu_custom_call.1} parent=75 // pred_check
          %p581 = pneg %p111
        $region90: #{tpu_custom_call.1} parent=75 // pred_check_branch
          %583 = sbr.rel (%p581) target = $region92
        $region91: #{tpu_custom_call.1} parent=75 // pred_region
          %584 = dma.done [#allocation9], 32
        $region92: #{tpu_custom_call.1} parent=75 // pred_fallthru
          _
        // Predicated region
        $region93: #{tpu_custom_call.1} parent=75 // pred_check
          %p585 = pneg %p132
        $region94: #{tpu_custom_call.1} parent=75 // pred_check_branch
          %587 = sbr.rel (%p585) target = $region96
        $region95: #{tpu_custom_call.1} parent=75 // pred_region
          %588 = dma.done [#allocation9], 32
        $region96: #{tpu_custom_call.1} parent=75 // pred_fallthru
          _
        %s589 = sand.u32 %s32, 1
        %s590 = scalar_lea.sflag [#allocation12], %s589
        %s591 = sand.u32 %s249, 1
        %s592 = smul.addr %s591, 16
        %s593 = scalar_lea.vmem [#allocation11], %s592
        // Predicated region
        $region97: #{tpu_custom_call.1} parent=75 // pred_check
          %p594 = pneg %p262
        $region98: #{tpu_custom_call.1} parent=75 // pred_check_branch
          %596 = sbr.rel (%p594) target = $region100
        $region99: #{tpu_custom_call.1} parent=75 // pred_region
          %597 = dma.done %s590, 256
        $region100: #{tpu_custom_call.1} parent=75 // pred_fallthru
          _
        %s598 = sand.u32 %s32, 1
        %s599 = scalar_lea.sflag [#allocation12], %s598
        %s600 = sand.u32 %s275, 1
        %s601 = smul.addr %s600, 16
        %s602 = scalar_lea.vmem [#allocation13], %s601
        // Predicated region
        $region101: #{tpu_custom_call.1} parent=75 // pred_check
          %p603 = pneg %p288
        $region102: #{tpu_custom_call.1} parent=75 // pred_check_branch
          %605 = sbr.rel (%p603) target = $region104
        $region103: #{tpu_custom_call.1} parent=75 // pred_region
          %606 = dma.done %s599, 256
        $region104: #{tpu_custom_call.1} parent=75 // pred_fallthru
          _
        %p607 = pneg %p48
        %p608 = pneg %p45
        %p609 = pneg %p69
        %p610 = pneg %p66
        %p611 = pneg %p90
        %p612 = pneg %p87
        %p613 = pneg %p111
        %p614 = pneg %p108
        %p615 = pneg %p132
        %p616 = pneg %p129
        %p617 = scmp.lt.s32.totalorder %s32, 1
        %s618 = scalar_select %p617, %s32, 1
        %s619 = smul.addr %s618, 4
        %s620 = smul.addr %s619, 4
        %s621 = scalar_lea.vmem %s5, %s620
        %p622 = pneg %p158
        %p623 = pneg %p155
        %p624 = scmp.lt.s32.totalorder %s32, 1
        %s625 = scalar_select %p624, %s32, 1
        %s626 = smul.addr %s625, 4
        %s627 = smul.addr %s626, 4
        %s628 = scalar_lea.vmem %s6, %s627
        %p629 = pneg %p184
        %p630 = pneg %p181
        %p631 = scmp.lt.s32.totalorder %s32, 1
        %s632 = scalar_select %p631, %s32, 1
        %s633 = smul.addr %s632, 4
        %s634 = smul.addr %s633, 4
        %s635 = scalar_lea.vmem %s7, %s634
        %p636 = pneg %p210
        %p637 = pneg %p207
        %p638 = scmp.lt.s32.totalorder %s32, 1
        %s639 = scalar_select %p638, %s32, 1
        %s640 = smul.addr %s639, 4
        %s641 = smul.addr %s640, 4
        %s642 = scalar_lea.vmem %s8, %s641
        %p643 = pneg %p236
        %p644 = pneg %p233
        %s645 = sand.u32 %s32, 1
        %s646 = scalar_lea.sflag [#allocation12], %s645
        %s647 = sand.u32 %s249, 1
        %s648 = smul.addr %s647, 16
        %s649 = scalar_lea.vmem [#allocation11], %s648
        %p650 = pneg %p262
        %p651 = pneg %p259
        %s652 = sand.u32 %s32, 1
        %s653 = scalar_lea.sflag [#allocation12], %s652
        %s654 = sand.u32 %s275, 1
        %s655 = smul.addr %s654, 16
        %s656 = scalar_lea.vmem [#allocation13], %s655
        %p657 = pneg %p288
        %p658 = pneg %p285
        %p659 = scmp.lt.s32.totalorder %s32, 1
        %s660 = scalar_select %p659, %s32, 1
        %s661 = smul.addr %s660, 8
        %s662 = smul.addr %s661, 4
        %s663 = scalar_lea.vmem %s11, %s662
        %p664 = pneg %p314
        %p665 = pneg %p311
        %p666 = scmp.lt.s32.totalorder %s32, 1
        %s667 = scalar_select %p666, %s32, 1
        %s668 = smul.addr %s667, 8
        %s669 = scalar_lea.vmem %s12, %s668
        %p670 = pneg %p340
        %p671 = pneg %p337
        %p672 = scmp.lt.s32.totalorder %s32, 1
        %s673 = scalar_select %p672, %s32, 1
        %s674 = scalar_lea.vmem %s13, %s673
        %p675 = pneg %p366
        %p676 = pneg %p363
        %p677 = pneg %p387
        %p678 = pneg %p384
        %p679 = scmp.lt.s32.totalorder %s32, 1
        %s680 = scalar_select %p679, %s32, 1
        %s681 = smul.addr %s680, 4
        %s682 = smul.addr %s681, 4
        %s683 = scalar_lea.vmem %s5, %s682
        %p684 = scmp.lt.s32.totalorder %s32, 1
        %s685 = scalar_select %p684, %s32, 1
        %s686 = smul.addr %s685, 4
        %s687 = smul.addr %s686, 4
        %s688 = scalar_lea.vmem %s6, %s687
        %p689 = scmp.lt.s32.totalorder %s32, 1
        %s690 = scalar_select %p689, %s32, 1
        %s691 = smul.addr %s690, 4
        %s692 = smul.addr %s691, 4
        %s693 = scalar_lea.vmem %s7, %s692
        %p694 = scmp.lt.s32.totalorder %s32, 1
        %s695 = scalar_select %p694, %s32, 1
        %s696 = smul.addr %s695, 4
        %s697 = smul.addr %s696, 4
        %s698 = scalar_lea.vmem %s8, %s697
        %p699 = scmp.lt.s32.totalorder %s32, 1
        %s700 = scalar_select %p699, %s32, 1
        %s701 = smul.addr %s700, 8
        %s702 = smul.addr %s701, 4
        %s703 = scalar_lea.vmem %s11, %s702
        %p704 = scmp.lt.s32.totalorder %s32, 1
        %s705 = scalar_select %p704, %s32, 1
        %s706 = smul.addr %s705, 8
        %s707 = scalar_lea.vmem %s12, %s706
        %p708 = scmp.lt.s32.totalorder %s32, 1
        %s709 = scalar_select %p708, %s32, 1
        %s710 = scalar_lea.vmem %s13, %s709
        %p712 = scmp.eq.s32.totalorder %s32, 0
        // Predicated region
        $region105: #{tpu_custom_call.1} parent=75 // pred_check
          %p713 = pneg %p712
        $region106: #{tpu_custom_call.1} parent=75 // pred_check_branch
          %715 = sbr.rel (%p713) target = $region108
        $region107: #{tpu_custom_call.1} parent=75 // pred_region
          %v716 = vld [vmem:[#allocation10] sm:$0x3]
          %v717 = vld [vmem:[#allocation2] sm:$0xff]
          %v718 = vld [vmem:[#allocation2 + $0x8] sm:$0xff]
          %vm719 = vcmask 261120
          %v720 = vsel %vm719, %v717, 0.0
          %721 = vadd.xlane.f32.xlu0 %v720
          %v722 = vpop.xlane.xlu0 %721
          %v723 = vsel %vm719, %v718, 0.0
          %724 = vadd.xlane.f32.xlu0 %v723
          %v725 = vpop.xlane.xlu0 %724
          %v726 = vrcp.pop 32.0
          %v727 = vmul.f32 %v722, %v726
          %v728 = vmul.f32 %v725, %v726
          %v729 = vsub.f32 %v717, %v727
          %v730 = vsub.f32 %v718, %v728
          %v731 = vmul.f32 %v729, %v729
          %v732 = vmul.f32 %v730, %v730
          %v733 = vsel %vm719, %v731, 0.0
          %734 = vadd.xlane.f32.xlu0 %v733
          %v735 = vpop.xlane.xlu0 %734
          %v736 = vsel %vm719, %v732, 0.0
          %737 = vadd.xlane.f32.xlu0 %v736
          %v738 = vpop.xlane.xlu0 %737
          %v739 = vmul.f32 %v735, %v726
          %v740 = vmul.f32 %v738, %v726
          %v741 = vadd.f32 %v739, 1e-06
          %v742 = vadd.f32 %v740, 1e-06
          %v743 = vrsqrt.pop %v741
          %v744 = vrsqrt.pop %v742
          %v745 = vmul.f32 %v729, %v743
          %v746 = vmul.f32 %v730, %v744
          %v747 = vlaneseq
          %v748 = vshrl.u32 %v747, 7
          %v749 = vsub.s32 0, %v748
          %v750 = vrot.slane %v716, %v749
          %v751 = vmul.f32 %v745, %v750
          %v752 = vmul.f32 %v746, %v750
          %v753 = vlaneseq
          %v754 = vshrl.u32 %v753, 7
          %v755 = vsub.s32 1, %v754
          %v756 = vrot.slane %v716, %v755
          %v757 = vadd.f32 %v751, %v756
          %v758 = vadd.f32 %v752, %v756
          %759 = vst.msk [vmem:[#allocation14] sm:$0xff] %vm719, %v757
          %760 = vst.msk [vmem:[#allocation14 + $0x8] sm:$0xff] %vm719, %v758
        $region108: #{tpu_custom_call.1} parent=75 // pred_fallthru
          _
        %v761 = vld [vmem:[#allocation14] sm:$0xff]
        %v762 = vld [vmem:[#allocation14 + $0x8] sm:$0xff]
        %v763 = vld [vmem:[#allocation5] sm:$0xf]
        %v764 = vld [vmem:[#allocation5 + $0x4] sm:$0xf]
        %v765 = vld [vmem:[%s707] sm:$0x7f]
        %v766 = vld [vmem:[#allocation7] sm:$0xff]
        %v767 = vld [vmem:[#allocation7 + $0x8] sm:$0xff]
        %v768 = vld [vmem:[#allocation8] sm:$0x3]
        %v769 = vpack.c.bf16 %v762, %v761
        %v770 = vld [vmem:[%s683] sm:$0xf]
        %v771 = vld [vmem:[%s683 + $0x4] sm:$0xf]
        %v772 = vld [vmem:[%s683 + $0x8] sm:$0xf]
        %v773 = vld [vmem:[%s683 + $0xc] sm:$0xf]
        %v778 = vunpack.c.l.b16 %v770
        %v779 = vunpack.c.l.b16 %v771
        %v780 = vunpack.c.l.b16 %v772
        %v781 = vunpack.c.l.b16 %v773
        %v782 = vpack.c.b16 %v779, %v778
        %v783 = vpack.c.b16 %v781, %v780
        %vm786 = vcmask 261120
        %v788 = vsel %vm786, %v769, 0
        %790 = vmatprep.subr.bf16.mxu0 0
        %791 = vmatpush1.bf16.msra.mxu0 %v782
        %792 = vmatprep.subr.bf16.mxu0 0
        %793 = vmatpush1.bf16.msra.mxu0 %v783
        %794 = vmatprep.subr.bf16.mxu0 0
        %795 = vmatpush1.bf16.msra.mxu0 0
        %796 = vmatprep.subr.bf16.mxu0 0
        %797 = vmatpush1.bf16.msra.mxu0 0
        %798 = vmatprep.subr.bf16.mxu0 0
        %799 = vmatpush1.bf16.msra.mxu0 0
        %800 = vmatprep.subr.bf16.mxu0 0
        %801 = vmatpush1.bf16.msra.mxu0 0
        %802 = vmatprep.subr.bf16.mxu0 0
        %803 = vmatpush1.bf16.msra.mxu0 0
        %804 = vmatprep.subr.bf16.mxu0 0
        %805 = vmatpush1.bf16.msra.mxu0 0
        %806 = vmatprep.subr.bf16.mxu0 0
        %807 = vmatpush1.bf16.msra.mxu0 0
        %808 = vmatprep.subr.bf16.mxu0 0
        %809 = vmatpush1.bf16.msra.mxu0 0
        %810 = vmatprep.subr.bf16.mxu0 0
        %811 = vmatpush1.bf16.msra.mxu0 0
        %812 = vmatprep.subr.bf16.mxu0 0
        %813 = vmatpush1.bf16.msra.mxu0 0
        %814 = vmatprep.subr.bf16.mxu0 0
        %815 = vmatpush1.bf16.msra.mxu0 0
        %816 = vmatprep.subr.bf16.mxu0 0
        %817 = vmatpush1.bf16.msra.mxu0 0
        %818 = vmatprep.subr.bf16.mxu0 0
        %819 = vmatpush1.bf16.msra.mxu0 0
        %820 = vmatprep.subr.bf16.mxu0 0
        %821 = vmatpush1.bf16.msra.mxu0 0
        %822 = vmatprep.mubr.bf16.mxu0 0
        %823 = vmatmul.mubr.bf16.gmra.mrb[0].mxu0 %v788
        %v824 = vpop.f32.mrb[0].mxu0
        %v825 = vadd.f32 0.0, %v824
        %v826 = vpop.f32.mrb[0].mxu0
        %v827 = vpop.f32.mrb[0].mxu0
        %v828 = vadd.f32 0.0, %v827
        %v829 = vpop.f32.mrb[0].mxu0
        %830 = vdwg.mxu0
        %v831 = vpack.c.bf16 %v828, %v825
        %833 = vrot.lane.b32.xlu0 %v831, 112
        %v834 = vpop.permute.xlu0 %833
        %v835 = vld [vmem:[%s688] sm:$0xf]
        %v836 = vld [vmem:[%s688 + $0x4] sm:$0xf]
        %v837 = vld [vmem:[%s688 + $0x8] sm:$0xf]
        %v838 = vld [vmem:[%s688 + $0xc] sm:$0xf]
        %v839 = vunpack.c.l.b16 %v831
        %v840 = vunpack.c.h.b16 %v831
        %v841 = vunpack.c.l.b16 %v834
        %v842 = vunpack.c.h.b16 %v834
        %v843 = vpack.c.b16 %v839, %v839
        %v844 = vpack.c.b16 %v840, %v840
        %v845 = vpack.c.b16 %v841, %v841
        %v846 = vpack.c.b16 %v842, %v842
        %847 = vrot.lane.b32.xlu0 %v843, 96
        %v848 = vpop.permute.xlu0 %847
        %vm849 = vcmask 130048
        %v851 = vsel %vm849, %v843, 0
        %v854 = vsel %vm849, %v848, 0
        %856 = vmatprep.subr.bf16.mxu0 0
        %857 = vmatpush1.bf16.xpose.msra.mxu0 %v854
        %858 = vmatprep.subr.bf16.mxu0 0
        %859 = vmatpush1.bf16.xpose.msra.mxu0 0
        %860 = vmatprep.subr.bf16.mxu0 0
        %861 = vmatpush1.bf16.xpose.msra.mxu0 0
        %862 = vmatprep.subr.bf16.mxu0 0
        %863 = vmatpush1.bf16.xpose.msra.mxu0 0
        %864 = vmatprep.subr.bf16.mxu0 0
        %865 = vmatpush1.bf16.xpose.msra.mxu0 0
        %866 = vmatprep.subr.bf16.mxu0 0
        %867 = vmatpush1.bf16.xpose.msra.mxu0 0
        %868 = vmatprep.subr.bf16.mxu0 0
        %869 = vmatpush1.bf16.xpose.msra.mxu0 0
        %870 = vmatprep.subr.bf16.mxu0 0
        %871 = vmatpush1.bf16.xpose.msra.mxu0 0
        %872 = vmatprep.subr.bf16.mxu0 0
        %873 = vmatpush1.bf16.xpose.msra.mxu0 0
        %874 = vmatprep.subr.bf16.mxu0 0
        %875 = vmatpush1.bf16.xpose.msra.mxu0 0
        %876 = vmatprep.subr.bf16.mxu0 0
        %877 = vmatpush1.bf16.xpose.msra.mxu0 0
        %878 = vmatprep.subr.bf16.mxu0 0
        %879 = vmatpush1.bf16.xpose.msra.mxu0 0
        %880 = vmatprep.subr.bf16.mxu0 0
        %881 = vmatpush1.bf16.xpose.msra.mxu0 0
        %882 = vmatprep.subr.bf16.mxu0 0
        %883 = vmatpush1.bf16.xpose.msra.mxu0 0
        %884 = vmatprep.subr.bf16.mxu0 0
        %885 = vmatpush1.bf16.xpose.msra.mxu0 0
        %886 = vmatprep.subr.bf16.mxu0 0
        %887 = vmatpush1.bf16.xpose.msra.mxu0 0
        %888 = vmatprep.mubr.bf16.mxu0 0
        %889 = vmatmul.mubr.bf16.gmra.mrb[0].mxu0 %v851
        %v890 = vpop.f32.mrb[0].mxu0
        %v891 = vadd.f32 0.0, %v890
        %v892 = vpop.f32.mrb[0].mxu0
        %v893 = vpop.f32.mrb[0].mxu0
        %v894 = vpop.f32.mrb[0].mxu0
        %895 = vdwg.mxu0
        %896 = vrot.lane.b32.xlu0 %v844, 96
        %v897 = vpop.permute.xlu0 %896
        %v899 = vsel %vm849, %v844, 0
        %v902 = vsel %vm849, %v897, 0
        %904 = vmatprep.subr.bf16.mxu0 0
        %905 = vmatpush1.bf16.xpose.msra.mxu0 %v902
        %906 = vmatprep.subr.bf16.mxu0 0
        %907 = vmatpush1.bf16.xpose.msra.mxu0 0
        %908 = vmatprep.subr.bf16.mxu0 0
        %909 = vmatpush1.bf16.xpose.msra.mxu0 0
        %910 = vmatprep.subr.bf16.mxu0 0
        %911 = vmatpush1.bf16.xpose.msra.mxu0 0
        %912 = vmatprep.subr.bf16.mxu0 0
        %913 = vmatpush1.bf16.xpose.msra.mxu0 0
        %914 = vmatprep.subr.bf16.mxu0 0
        %915 = vmatpush1.bf16.xpose.msra.mxu0 0
        %916 = vmatprep.subr.bf16.mxu0 0
        %917 = vmatpush1.bf16.xpose.msra.mxu0 0
        %918 = vmatprep.subr.bf16.mxu0 0
        %919 = vmatpush1.bf16.xpose.msra.mxu0 0
        %920 = vmatprep.subr.bf16.mxu0 0
        %921 = vmatpush1.bf16.xpose.msra.mxu0 0
        %922 = vmatprep.subr.bf16.mxu0 0
        %923 = vmatpush1.bf16.xpose.msra.mxu0 0
        %924 = vmatprep.subr.bf16.mxu0 0
        %925 = vmatpush1.bf16.xpose.msra.mxu0 0
        %926 = vmatprep.subr.bf16.mxu0 0
        %927 = vmatpush1.bf16.xpose.msra.mxu0 0
        %928 = vmatprep.subr.bf16.mxu0 0
        %929 = vmatpush1.bf16.xpose.msra.mxu0 0
        %930 = vmatprep.subr.bf16.mxu0 0
        %931 = vmatpush1.bf16.xpose.msra.mxu0 0
        %932 = vmatprep.subr.bf16.mxu0 0
        %933 = vmatpush1.bf16.xpose.msra.mxu0 0
        %934 = vmatprep.subr.bf16.mxu0 0
        %935 = vmatpush1.bf16.xpose.msra.mxu0 0
        %936 = vmatprep.mubr.bf16.mxu0 0
        %937 = vmatmul.mubr.bf16.gmra.mrb[0].mxu0 %v899
        %v938 = vpop.f32.mrb[0].mxu0
        %v939 = vadd.f32 0.0, %v938
        %v940 = vpop.f32.mrb[0].mxu0
        %v941 = vpop.f32.mrb[0].mxu0
        %v942 = vpop.f32.mrb[0].mxu0
        %943 = vdwg.mxu0
        %944 = vrot.lane.b32.xlu0 %v845, 96
        %v945 = vpop.permute.xlu0 %944
        %v947 = vsel %vm849, %v845, 0
        %v950 = vsel %vm849, %v945, 0
        %952 = vmatprep.subr.bf16.mxu0 0
        %953 = vmatpush1.bf16.xpose.msra.mxu0 %v950
        %954 = vmatprep.subr.bf16.mxu0 0
        %955 = vmatpush1.bf16.xpose.msra.mxu0 0
        %956 = vmatprep.subr.bf16.mxu0 0
        %957 = vmatpush1.bf16.xpose.msra.mxu0 0
        %958 = vmatprep.subr.bf16.mxu0 0
        %959 = vmatpush1.bf16.xpose.msra.mxu0 0
        %960 = vmatprep.subr.bf16.mxu0 0
        %961 = vmatpush1.bf16.xpose.msra.mxu0 0
        %962 = vmatprep.subr.bf16.mxu0 0
        %963 = vmatpush1.bf16.xpose.msra.mxu0 0
        %964 = vmatprep.subr.bf16.mxu0 0
        %965 = vmatpush1.bf16.xpose.msra.mxu0 0
        %966 = vmatprep.subr.bf16.mxu0 0
        %967 = vmatpush1.bf16.xpose.msra.mxu0 0
        %968 = vmatprep.subr.bf16.mxu0 0
        %969 = vmatpush1.bf16.xpose.msra.mxu0 0
        %970 = vmatprep.subr.bf16.mxu0 0
        %971 = vmatpush1.bf16.xpose.msra.mxu0 0
        %972 = vmatprep.subr.bf16.mxu0 0
        %973 = vmatpush1.bf16.xpose.msra.mxu0 0
        %974 = vmatprep.subr.bf16.mxu0 0
        %975 = vmatpush1.bf16.xpose.msra.mxu0 0
        %976 = vmatprep.subr.bf16.mxu0 0
        %977 = vmatpush1.bf16.xpose.msra.mxu0 0
        %978 = vmatprep.subr.bf16.mxu0 0
        %979 = vmatpush1.bf16.xpose.msra.mxu0 0
        %980 = vmatprep.subr.bf16.mxu0 0
        %981 = vmatpush1.bf16.xpose.msra.mxu0 0
        %982 = vmatprep.subr.bf16.mxu0 0
        %983 = vmatpush1.bf16.xpose.msra.mxu0 0
        %984 = vmatprep.mubr.bf16.mxu0 0
        %985 = vmatmul.mubr.bf16.gmra.mrb[0].mxu0 %v947
        %v986 = vpop.f32.mrb[0].mxu0
        %v987 = vadd.f32 0.0, %v986
        %v988 = vpop.f32.mrb[0].mxu0
        %v989 = vpop.f32.mrb[0].mxu0
        %v990 = vpop.f32.mrb[0].mxu0
        %991 = vdwg.mxu0
        %992 = vrot.lane.b32.xlu0 %v846, 96
        %v993 = vpop.permute.xlu0 %992
        %v995 = vsel %vm849, %v846, 0
        %v998 = vsel %vm849, %v993, 0
        %1000 = vmatprep.subr.bf16.mxu0 0
        %1001 = vmatpush1.bf16.xpose.msra.mxu0 %v998
        %1002 = vmatprep.subr.bf16.mxu0 0
        %1003 = vmatpush1.bf16.xpose.msra.mxu0 0
        %1004 = vmatprep.subr.bf16.mxu0 0
        %1005 = vmatpush1.bf16.xpose.msra.mxu0 0
        %1006 = vmatprep.subr.bf16.mxu0 0
        %1007 = vmatpush1.bf16.xpose.msra.mxu0 0
        %1008 = vmatprep.subr.bf16.mxu0 0
        %1009 = vmatpush1.bf16.xpose.msra.mxu0 0
        %1010 = vmatprep.subr.bf16.mxu0 0
        %1011 = vmatpush1.bf16.xpose.msra.mxu0 0
        %1012 = vmatprep.subr.bf16.mxu0 0
        %1013 = vmatpush1.bf16.xpose.msra.mxu0 0
        %1014 = vmatprep.subr.bf16.mxu0 0
        %1015 = vmatpush1.bf16.xpose.msra.mxu0 0
        %1016 = vmatprep.subr.bf16.mxu0 0
        %1017 = vmatpush1.bf16.xpose.msra.mxu0 0
        %1018 = vmatprep.subr.bf16.mxu0 0
        %1019 = vmatpush1.bf16.xpose.msra.mxu0 0
        %1020 = vmatprep.subr.bf16.mxu0 0
        %1021 = vmatpush1.bf16.xpose.msra.mxu0 0
        %1022 = vmatprep.subr.bf16.mxu0 0
        %1023 = vmatpush1.bf16.xpose.msra.mxu0 0
        %1024 = vmatprep.subr.bf16.mxu0 0
        %1025 = vmatpush1.bf16.xpose.msra.mxu0 0
        %1026 = vmatprep.subr.bf16.mxu0 0
        %1027 = vmatpush1.bf16.xpose.msra.mxu0 0
        %1028 = vmatprep.subr.bf16.mxu0 0
        %1029 = vmatpush1.bf16.xpose.msra.mxu0 0
        %1030 = vmatprep.subr.bf16.mxu0 0
        %1031 = vmatpush1.bf16.xpose.msra.mxu0 0
        %1032 = vmatprep.mubr.bf16.mxu0 0
        %1033 = vmatmul.mubr.bf16.gmra.mrb[0].mxu0 %v995
        %v1034 = vpop.f32.mrb[0].mxu0
        %v1035 = vadd.f32 0.0, %v1034
        %v1036 = vpop.f32.mrb[0].mxu0
        %v1037 = vpop.f32.mrb[0].mxu0
        %v1038 = vpop.f32.mrb[0].mxu0
        %1039 = vdwg.mxu0
        %v1040 = vadd.f32 %v891, %v766
        %v1041 = vadd.f32 %v939, %v767
        %v1042 = vadd.f32 %v987, %v766
        %v1043 = vadd.f32 %v1035, %v767
        %vm1044 = vcmask 64512
        %v1045 = vsel %vm1044, %v1040, -inf
        %1046 = vmax.xlane.f32.xlu0 %v1045
        %v1047 = vpop.xlane.xlu0 %1046
        %v1048 = vsel %vm1044, %v1041, -inf
        %1049 = vmax.xlane.f32.xlu0 %v1048
        %v1050 = vpop.xlane.xlu0 %1049
        %v1051 = vsel %vm1044, %v1042, -inf
        %1052 = vmax.xlane.f32.xlu0 %v1051
        %v1053 = vpop.xlane.xlu0 %1052
        %v1054 = vsel %vm1044, %v1043, -inf
        %1055 = vmax.xlane.f32.xlu0 %v1054
        %v1056 = vpop.xlane.xlu0 %1055
        %v1057 = vsub.f32 %v1040, %v1047
        %v1058 = vsub.f32 %v1041, %v1050
        %v1059 = vsub.f32 %v1042, %v1053
        %v1060 = vsub.f32 %v1043, %v1056
        %v1061 = vmul.f32 %v1057, 1.442695
        %v1062 = vpow.pop %v1061
        %v1063 = vmul.f32 %v1058, 1.442695
        %v1064 = vpow.pop %v1063
        %v1065 = vmul.f32 %v1059, 1.442695
        %v1066 = vpow.pop %v1065
        %v1067 = vmul.f32 %v1060, 1.442695
        %v1068 = vpow.pop %v1067
        %v1069 = vsel %vm1044, %v1062, 0.0
        %1070 = vadd.xlane.f32.xlu0 %v1069
        %v1071 = vpop.xlane.xlu0 %1070
        %v1072 = vsel %vm1044, %v1064, 0.0
        %1073 = vadd.xlane.f32.xlu0 %v1072
        %v1074 = vpop.xlane.xlu0 %1073
        %v1075 = vsel %vm1044, %v1066, 0.0
        %1076 = vadd.xlane.f32.xlu0 %v1075
        %v1077 = vpop.xlane.xlu0 %1076
        %v1078 = vsel %vm1044, %v1068, 0.0
        %1079 = vadd.xlane.f32.xlu0 %v1078
        %v1080 = vpop.xlane.xlu0 %1079
        %v1081 = vrcp.pop %v1071
        %v1082 = vmul.f32 %v1062, %v1081
        %v1083 = vrcp.pop %v1074
        %v1084 = vmul.f32 %v1064, %v1083
        %v1085 = vrcp.pop %v1077
        %v1086 = vmul.f32 %v1066, %v1085
        %v1087 = vrcp.pop %v1080
        %v1088 = vmul.f32 %v1068, %v1087
        %v1089 = vpack.c.bf16 %v1082, %v1082
        %v1090 = vpack.c.bf16 %v1084, %v1084
        %v1091 = vpack.c.bf16 %v1086, %v1086
        %v1092 = vpack.c.bf16 %v1088, %v1088
        %1093 = vrot.lane.b32.xlu0 %v843, 64
        %v1094 = vpop.permute.xlu0 %1093
        %v1096 = vsel %vm1044, %v1089, 0
        %vm1098 = vcmask 1043456
        %v1100 = vsel %vm1098, %v1094, 0
        %1102 = vmatprep.subr.bf16.mxu0 0
        %1103 = vmatpush1.bf16.msra.mxu0 %v1100
        %1104 = vmatprep.subr.bf16.mxu0 0
        %1105 = vmatpush1.bf16.msra.mxu0 0
        %1106 = vmatprep.subr.bf16.mxu0 0
        %1107 = vmatpush1.bf16.msra.mxu0 0
        %1108 = vmatprep.subr.bf16.mxu0 0
        %1109 = vmatpush1.bf16.msra.mxu0 0
        %1110 = vmatprep.subr.bf16.mxu0 0
        %1111 = vmatpush1.bf16.msra.mxu0 0
        %1112 = vmatprep.subr.bf16.mxu0 0
        %1113 = vmatpush1.bf16.msra.mxu0 0
        %1114 = vmatprep.subr.bf16.mxu0 0
        %1115 = vmatpush1.bf16.msra.mxu0 0
        %1116 = vmatprep.subr.bf16.mxu0 0
        %1117 = vmatpush1.bf16.msra.mxu0 0
        %1118 = vmatprep.subr.bf16.mxu0 0
        %1119 = vmatpush1.bf16.msra.mxu0 0
        %1120 = vmatprep.subr.bf16.mxu0 0
        %1121 = vmatpush1.bf16.msra.mxu0 0
        %1122 = vmatprep.subr.bf16.mxu0 0
        %1123 = vmatpush1.bf16.msra.mxu0 0
        %1124 = vmatprep.subr.bf16.mxu0 0
        %1125 = vmatpush1.bf16.msra.mxu0 0
        %1126 = vmatprep.subr.bf16.mxu0 0
        %1127 = vmatpush1.bf16.msra.mxu0 0
        %1128 = vmatprep.subr.bf16.mxu0 0
        %1129 = vmatpush1.bf16.msra.mxu0 0
        %1130 = vmatprep.subr.bf16.mxu0 0
        %1131 = vmatpush1.bf16.msra.mxu0 0
        %1132 = vmatprep.subr.bf16.mxu0 0
        %1133 = vmatpush1.bf16.msra.mxu0 0
        %1134 = vmatprep.mubr.bf16.mxu0 0
        %1135 = vmatmul.mubr.bf16.gmra.mrb[0].mxu0 %v1096
        %v1136 = vpop.f32.mrb[0].mxu0
        %v1137 = vadd.f32 0.0, %v1136
        %v1138 = vpop.f32.mrb[0].mxu0
        %v1139 = vpop.f32.mrb[0].mxu0
        %v1140 = vpop.f32.mrb[0].mxu0
        %1141 = vdwg.mxu0
        %1142 = vrot.lane.b32.xlu0 %v844, 64
        %v1143 = vpop.permute.xlu0 %1142
        %v1145 = vsel %vm1044, %v1090, 0
        %v1148 = vsel %vm1098, %v1143, 0
        %1150 = vmatprep.subr.bf16.mxu0 0
        %1151 = vmatpush1.bf16.msra.mxu0 %v1148
        %1152 = vmatprep.subr.bf16.mxu0 0
        %1153 = vmatpush1.bf16.msra.mxu0 0
        %1154 = vmatprep.subr.bf16.mxu0 0
        %1155 = vmatpush1.bf16.msra.mxu0 0
        %1156 = vmatprep.subr.bf16.mxu0 0
        %1157 = vmatpush1.bf16.msra.mxu0 0
        %1158 = vmatprep.subr.bf16.mxu0 0
        %1159 = vmatpush1.bf16.msra.mxu0 0
        %1160 = vmatprep.subr.bf16.mxu0 0
        %1161 = vmatpush1.bf16.msra.mxu0 0
        %1162 = vmatprep.subr.bf16.mxu0 0
        %1163 = vmatpush1.bf16.msra.mxu0 0
        %1164 = vmatprep.subr.bf16.mxu0 0
        %1165 = vmatpush1.bf16.msra.mxu0 0
        %1166 = vmatprep.subr.bf16.mxu0 0
        %1167 = vmatpush1.bf16.msra.mxu0 0
        %1168 = vmatprep.subr.bf16.mxu0 0
        %1169 = vmatpush1.bf16.msra.mxu0 0
        %1170 = vmatprep.subr.bf16.mxu0 0
        %1171 = vmatpush1.bf16.msra.mxu0 0
        %1172 = vmatprep.subr.bf16.mxu0 0
        %1173 = vmatpush1.bf16.msra.mxu0 0
        %1174 = vmatprep.subr.bf16.mxu0 0
        %1175 = vmatpush1.bf16.msra.mxu0 0
        %1176 = vmatprep.subr.bf16.mxu0 0
        %1177 = vmatpush1.bf16.msra.mxu0 0
        %1178 = vmatprep.subr.bf16.mxu0 0
        %1179 = vmatpush1.bf16.msra.mxu0 0
        %1180 = vmatprep.subr.bf16.mxu0 0
        %1181 = vmatpush1.bf16.msra.mxu0 0
        %1182 = vmatprep.mubr.bf16.mxu0 0
        %1183 = vmatmul.mubr.bf16.gmra.mrb[0].mxu0 %v1145
        %v1184 = vpop.f32.mrb[0].mxu0
        %v1185 = vadd.f32 0.0, %v1184
        %v1186 = vpop.f32.mrb[0].mxu0
        %v1187 = vpop.f32.mrb[0].mxu0
        %v1188 = vpop.f32.mrb[0].mxu0
        %1189 = vdwg.mxu0
        %1190 = vrot.lane.b32.xlu0 %v845, 64
        %v1191 = vpop.permute.xlu0 %1190
        %v1193 = vsel %vm1044, %v1091, 0
        %v1196 = vsel %vm1098, %v1191, 0
        %1198 = vmatprep.subr.bf16.mxu0 0
        %1199 = vmatpush1.bf16.msra.mxu0 %v1196
        %1200 = vmatprep.subr.bf16.mxu0 0
        %1201 = vmatpush1.bf16.msra.mxu0 0
        %1202 = vmatprep.subr.bf16.mxu0 0
        %1203 = vmatpush1.bf16.msra.mxu0 0
        %1204 = vmatprep.subr.bf16.mxu0 0
        %1205 = vmatpush1.bf16.msra.mxu0 0
        %1206 = vmatprep.subr.bf16.mxu0 0
        %1207 = vmatpush1.bf16.msra.mxu0 0
        %1208 = vmatprep.subr.bf16.mxu0 0
        %1209 = vmatpush1.bf16.msra.mxu0 0
        %1210 = vmatprep.subr.bf16.mxu0 0
        %1211 = vmatpush1.bf16.msra.mxu0 0
        %1212 = vmatprep.subr.bf16.mxu0 0
        %1213 = vmatpush1.bf16.msra.mxu0 0
        %1214 = vmatprep.subr.bf16.mxu0 0
        %1215 = vmatpush1.bf16.msra.mxu0 0
        %1216 = vmatprep.subr.bf16.mxu0 0
        %1217 = vmatpush1.bf16.msra.mxu0 0
        %1218 = vmatprep.subr.bf16.mxu0 0
        %1219 = vmatpush1.bf16.msra.mxu0 0
        %1220 = vmatprep.subr.bf16.mxu0 0
        %1221 = vmatpush1.bf16.msra.mxu0 0
        %1222 = vmatprep.subr.bf16.mxu0 0
        %1223 = vmatpush1.bf16.msra.mxu0 0
        %1224 = vmatprep.subr.bf16.mxu0 0
        %1225 = vmatpush1.bf16.msra.mxu0 0
        %1226 = vmatprep.subr.bf16.mxu0 0
        %1227 = vmatpush1.bf16.msra.mxu0 0
        %1228 = vmatprep.subr.bf16.mxu0 0
        %1229 = vmatpush1.bf16.msra.mxu0 0
        %1230 = vmatprep.mubr.bf16.mxu0 0
        %1231 = vmatmul.mubr.bf16.gmra.mrb[0].mxu0 %v1193
        %v1232 = vpop.f32.mrb[0].mxu0
        %v1233 = vadd.f32 0.0, %v1232
        %v1234 = vpop.f32.mrb[0].mxu0
        %v1235 = vpop.f32.mrb[0].mxu0
        %v1236 = vpop.f32.mrb[0].mxu0
        %1237 = vdwg.mxu0
        %1238 = vrot.lane.b32.xlu0 %v846, 64
        %v1239 = vpop.permute.xlu0 %1238
        %v1241 = vsel %vm1044, %v1092, 0
        %v1244 = vsel %vm1098, %v1239, 0
        %1246 = vmatprep.subr.bf16.mxu0 0
        %1247 = vmatpush1.bf16.msra.mxu0 %v1244
        %1248 = vmatprep.subr.bf16.mxu0 0
        %1249 = vmatpush1.bf16.msra.mxu0 0
        %1250 = vmatprep.subr.bf16.mxu0 0
        %1251 = vmatpush1.bf16.msra.mxu0 0
        %1252 = vmatprep.subr.bf16.mxu0 0
        %1253 = vmatpush1.bf16.msra.mxu0 0
        %1254 = vmatprep.subr.bf16.mxu0 0
        %1255 = vmatpush1.bf16.msra.mxu0 0
        %1256 = vmatprep.subr.bf16.mxu0 0
        %1257 = vmatpush1.bf16.msra.mxu0 0
        %1258 = vmatprep.subr.bf16.mxu0 0
        %1259 = vmatpush1.bf16.msra.mxu0 0
        %1260 = vmatprep.subr.bf16.mxu0 0
        %1261 = vmatpush1.bf16.msra.mxu0 0
        %1262 = vmatprep.subr.bf16.mxu0 0
        %1263 = vmatpush1.bf16.msra.mxu0 0
        %1264 = vmatprep.subr.bf16.mxu0 0
        %1265 = vmatpush1.bf16.msra.mxu0 0
        %1266 = vmatprep.subr.bf16.mxu0 0
        %1267 = vmatpush1.bf16.msra.mxu0 0
        %1268 = vmatprep.subr.bf16.mxu0 0
        %1269 = vmatpush1.bf16.msra.mxu0 0
        %1270 = vmatprep.subr.bf16.mxu0 0
        %1271 = vmatpush1.bf16.msra.mxu0 0
        %1272 = vmatprep.subr.bf16.mxu0 0
        %1273 = vmatpush1.bf16.msra.mxu0 0
        %1274 = vmatprep.subr.bf16.mxu0 0
        %1275 = vmatpush1.bf16.msra.mxu0 0
        %1276 = vmatprep.subr.bf16.mxu0 0
        %1277 = vmatpush1.bf16.msra.mxu0 0
        %1278 = vmatprep.mubr.bf16.mxu0 0
        %1279 = vmatmul.mubr.bf16.gmra.mrb[0].mxu0 %v1241
        %v1280 = vpop.f32.mrb[0].mxu0
        %v1281 = vadd.f32 0.0, %v1280
        %v1282 = vpop.f32.mrb[0].mxu0
        %v1283 = vpop.f32.mrb[0].mxu0
        %v1284 = vpop.f32.mrb[0].mxu0
        %1285 = vdwg.mxu0
        %v1286 = vpack.c.bf16 %v1185, %v1137
        %v1287 = vpack.c.bf16 %v1281, %v1233
        %1289 = vrot.lane.b32.xlu0 %v1287, 16
        %v1290 = vpop.permute.xlu0 %1289
        %v1293 = vsel %vm849, %v1286, %v1290
        %v1298 = vunpack.c.l.b16 %v835
        %v1299 = vunpack.c.l.b16 %v836
        %v1300 = vunpack.c.l.b16 %v837
        %v1301 = vunpack.c.l.b16 %v838
        %v1302 = vpack.c.b16 %v1299, %v1298
        %v1303 = vpack.c.b16 %v1301, %v1300
        %v1306 = vsel %vm786, %v1293, 0
        %1308 = vmatprep.subr.bf16.mxu0 0
        %1309 = vmatpush1.bf16.msra.mxu0 %v1302
        %1310 = vmatprep.subr.bf16.mxu0 0
        %1311 = vmatpush1.bf16.msra.mxu0 %v1303
        %1312 = vmatprep.subr.bf16.mxu0 0
        %1313 = vmatpush1.bf16.msra.mxu0 0
        %1314 = vmatprep.subr.bf16.mxu0 0
        %1315 = vmatpush1.bf16.msra.mxu0 0
        %1316 = vmatprep.subr.bf16.mxu0 0
        %1317 = vmatpush1.bf16.msra.mxu0 0
        %1318 = vmatprep.subr.bf16.mxu0 0
        %1319 = vmatpush1.bf16.msra.mxu0 0
        %1320 = vmatprep.subr.bf16.mxu0 0
        %1321 = vmatpush1.bf16.msra.mxu0 0
        %1322 = vmatprep.subr.bf16.mxu0 0
        %1323 = vmatpush1.bf16.msra.mxu0 0
        %1324 = vmatprep.subr.bf16.mxu0 0
        %1325 = vmatpush1.bf16.msra.mxu0 0
        %1326 = vmatprep.subr.bf16.mxu0 0
        %1327 = vmatpush1.bf16.msra.mxu0 0
        %1328 = vmatprep.subr.bf16.mxu0 0
        %1329 = vmatpush1.bf16.msra.mxu0 0
        %1330 = vmatprep.subr.bf16.mxu0 0
        %1331 = vmatpush1.bf16.msra.mxu0 0
        %1332 = vmatprep.subr.bf16.mxu0 0
        %1333 = vmatpush1.bf16.msra.mxu0 0
        %1334 = vmatprep.subr.bf16.mxu0 0
        %1335 = vmatpush1.bf16.msra.mxu0 0
        %1336 = vmatprep.subr.bf16.mxu0 0
        %1337 = vmatpush1.bf16.msra.mxu0 0
        %1338 = vmatprep.subr.bf16.mxu0 0
        %1339 = vmatpush1.bf16.msra.mxu0 0
        %1340 = vmatprep.mubr.bf16.mxu0 0
        %1341 = vmatmul.mubr.bf16.gmra.mrb[0].mxu0 %v1306
        %v1342 = vpop.f32.mrb[0].mxu0
        %v1343 = vadd.f32 %v761, %v1342
        %v1344 = vpop.f32.mrb[0].mxu0
        %v1345 = vpop.f32.mrb[0].mxu0
        %v1346 = vadd.f32 %v762, %v1345
        %v1347 = vpop.f32.mrb[0].mxu0
        %1348 = vdwg.mxu0
        %v1349 = vsel %vm786, %v1343, 0.0
        %1350 = vadd.xlane.f32.xlu0 %v1349
        %v1351 = vpop.xlane.xlu0 %1350
        %v1352 = vsel %vm786, %v1346, 0.0
        %1353 = vadd.xlane.f32.xlu0 %v1352
        %v1354 = vpop.xlane.xlu0 %1353
        %v1355 = vrcp.pop 32.0
        %v1356 = vmul.f32 %v1351, %v1355
        %v1357 = vmul.f32 %v1354, %v1355
        %v1358 = vsub.f32 %v1343, %v1356
        %v1359 = vsub.f32 %v1346, %v1357
        %v1360 = vmul.f32 %v1358, %v1358
        %v1361 = vmul.f32 %v1359, %v1359
        %v1362 = vsel %vm786, %v1360, 0.0
        %1363 = vadd.xlane.f32.xlu0 %v1362
        %v1364 = vpop.xlane.xlu0 %1363
        %v1365 = vsel %vm786, %v1361, 0.0
        %1366 = vadd.xlane.f32.xlu0 %v1365
        %v1367 = vpop.xlane.xlu0 %1366
        %v1368 = vmul.f32 %v1364, %v1355
        %v1369 = vmul.f32 %v1367, %v1355
        %v1370 = vadd.f32 %v1368, 1e-06
        %v1371 = vadd.f32 %v1369, 1e-06
        %v1372 = vrsqrt.pop %v1370
        %v1373 = vrsqrt.pop %v1371
        %v1374 = vmul.f32 %v1358, %v1372
        %v1375 = vmul.f32 %v1359, %v1373
        %v1376 = vlaneseq
        %v1377 = vshrl.u32 %v1376, 7
        %v1378 = vsub.s32 0, %v1377
        %v1379 = vrot.slane %v765, %v1378
        %v1380 = vmul.f32 %v1374, %v1379
        %v1381 = vmul.f32 %v1375, %v1379
        %v1382 = vlaneseq
        %v1383 = vshrl.u32 %v1382, 7
        %v1384 = vsub.s32 1, %v1383
        %v1385 = vrot.slane %v765, %v1384
        %v1386 = vadd.f32 %v1380, %v1385
        %v1387 = vadd.f32 %v1381, %v1385
        %v1388 = vpack.c.bf16 %v1387, %v1386
        %v1389 = vld [vmem:[%s693] sm:$0xf]
        %v1390 = vld [vmem:[%s693 + $0x4] sm:$0xf]
        %v1391 = vld [vmem:[%s693 + $0x8] sm:$0xf]
        %v1392 = vld [vmem:[%s693 + $0xc] sm:$0xf]
        %v1397 = vunpack.c.l.b16 %v1389
        %v1398 = vunpack.c.l.b16 %v1390
        %v1399 = vunpack.c.l.b16 %v1391
        %v1400 = vunpack.c.l.b16 %v1392
        %v1401 = vpack.c.b16 %v1398, %v1397
        %v1402 = vpack.c.b16 %v1400, %v1399
        %v1406 = vsel %vm786, %v1388, 0
        %1408 = vmatprep.subr.bf16.mxu0 0
        %1409 = vmatpush1.bf16.msra.mxu0 %v1401
        %1410 = vmatprep.subr.bf16.mxu0 0
        %1411 = vmatpush1.bf16.msra.mxu0 %v1402
        %1412 = vmatprep.subr.bf16.mxu0 0
        %1413 = vmatpush1.bf16.msra.mxu0 0
        %1414 = vmatprep.subr.bf16.mxu0 0
        %1415 = vmatpush1.bf16.msra.mxu0 0
        %1416 = vmatprep.subr.bf16.mxu0 0
        %1417 = vmatpush1.bf16.msra.mxu0 0
        %1418 = vmatprep.subr.bf16.mxu0 0
        %1419 = vmatpush1.bf16.msra.mxu0 0
        %1420 = vmatprep.subr.bf16.mxu0 0
        %1421 = vmatpush1.bf16.msra.mxu0 0
        %1422 = vmatprep.subr.bf16.mxu0 0
        %1423 = vmatpush1.bf16.msra.mxu0 0
        %1424 = vmatprep.subr.bf16.mxu0 0
        %1425 = vmatpush1.bf16.msra.mxu0 0
        %1426 = vmatprep.subr.bf16.mxu0 0
        %1427 = vmatpush1.bf16.msra.mxu0 0
        %1428 = vmatprep.subr.bf16.mxu0 0
        %1429 = vmatpush1.bf16.msra.mxu0 0
        %1430 = vmatprep.subr.bf16.mxu0 0
        %1431 = vmatpush1.bf16.msra.mxu0 0
        %1432 = vmatprep.subr.bf16.mxu0 0
        %1433 = vmatpush1.bf16.msra.mxu0 0
        %1434 = vmatprep.subr.bf16.mxu0 0
        %1435 = vmatpush1.bf16.msra.mxu0 0
        %1436 = vmatprep.subr.bf16.mxu0 0
        %1437 = vmatpush1.bf16.msra.mxu0 0
        %1438 = vmatprep.subr.bf16.mxu0 0
        %1439 = vmatpush1.bf16.msra.mxu0 0
        %1440 = vmatprep.mubr.bf16.mxu0 0
        %1441 = vmatmul.mubr.bf16.gmra.mrb[0].mxu0 %v1406
        %v1442 = vpop.f32.mrb[0].mxu0
        %v1443 = vadd.f32 0.0, %v1442
        %v1444 = vpop.f32.mrb[0].mxu0
        %v1445 = vpop.f32.mrb[0].mxu0
        %v1446 = vadd.f32 0.0, %v1445
        %v1447 = vpop.f32.mrb[0].mxu0
        %1448 = vdwg.mxu0
        %v1449 = vpack.c.bf16 %v1446, %v1443
        %v1450 = vld [vmem:[%s698] sm:$0xf]
        %v1451 = vld [vmem:[%s698 + $0x4] sm:$0xf]
        %v1452 = vld [vmem:[%s698 + $0x8] sm:$0xf]
        %v1453 = vld [vmem:[%s698 + $0xc] sm:$0xf]
        %v1456 = vunpack.c.l.b16 %v763
        %v1457 = vunpack.c.l.b16 %v764
        %v1458 = vpack.c.b16 %v1457, %v1456
        %v1463 = vunpack.c.l.b16 %v1450
        %v1464 = vunpack.c.l.b16 %v1451
        %v1465 = vunpack.c.l.b16 %v1452
        %v1466 = vunpack.c.l.b16 %v1453
        %v1467 = vpack.c.b16 %v1464, %v1463
        %v1468 = vpack.c.b16 %v1466, %v1465
        %v1472 = vsel %vm786, %v1458, 0
        %1474 = vmatprep.subr.bf16.mxu0 0
        %1475 = vmatpush1.bf16.msra.mxu0 %v1467
        %1476 = vmatprep.subr.bf16.mxu0 0
        %1477 = vmatpush1.bf16.msra.mxu0 %v1468
        %1478 = vmatprep.subr.bf16.mxu0 0
        %1479 = vmatpush1.bf16.msra.mxu0 0
        %1480 = vmatprep.subr.bf16.mxu0 0
        %1481 = vmatpush1.bf16.msra.mxu0 0
        %1482 = vmatprep.subr.bf16.mxu0 0
        %1483 = vmatpush1.bf16.msra.mxu0 0
        %1484 = vmatprep.subr.bf16.mxu0 0
        %1485 = vmatpush1.bf16.msra.mxu0 0
        %1486 = vmatprep.subr.bf16.mxu0 0
        %1487 = vmatpush1.bf16.msra.mxu0 0
        %1488 = vmatprep.subr.bf16.mxu0 0
        %1489 = vmatpush1.bf16.msra.mxu0 0
        %1490 = vmatprep.subr.bf16.mxu0 0
        %1491 = vmatpush1.bf16.msra.mxu0 0
        %1492 = vmatprep.subr.bf16.mxu0 0
        %1493 = vmatpush1.bf16.msra.mxu0 0
        %1494 = vmatprep.subr.bf16.mxu0 0
        %1495 = vmatpush1.bf16.msra.mxu0 0
        %1496 = vmatprep.subr.bf16.mxu0 0
        %1497 = vmatpush1.bf16.msra.mxu0 0
        %1498 = vmatprep.subr.bf16.mxu0 0
        %1499 = vmatpush1.bf16.msra.mxu0 0
        %1500 = vmatprep.subr.bf16.mxu0 0
        %1501 = vmatpush1.bf16.msra.mxu0 0
        %1502 = vmatprep.subr.bf16.mxu0 0
        %1503 = vmatpush1.bf16.msra.mxu0 0
        %1504 = vmatprep.subr.bf16.mxu0 0
        %1505 = vmatpush1.bf16.msra.mxu0 0
        %1506 = vmatprep.mubr.bf16.mxu0 0
        %1507 = vmatmul.mubr.bf16.gmra.mrb[0].mxu0 %v1472
        %v1508 = vpop.f32.mrb[0].mxu0
        %v1509 = vadd.f32 0.0, %v1508
        %v1510 = vpop.f32.mrb[0].mxu0
        %v1511 = vpop.f32.mrb[0].mxu0
        %v1512 = vadd.f32 0.0, %v1511
        %v1513 = vpop.f32.mrb[0].mxu0
        %1514 = vdwg.mxu0
        %v1515 = vpack.c.bf16 %v1512, %v1509
        %1517 = vrot.lane.b32.xlu0 %v1449, 112
        %v1518 = vpop.permute.xlu0 %1517
        %1520 = vrot.lane.b32.xlu0 %v1515, 112
        %v1521 = vpop.permute.xlu0 %1520
        %v1522 = vld [vmem:[%s593] sm:$0xf]
        %v1523 = vld [vmem:[%s593 + $0x4] sm:$0xf]
        %v1524 = vld [vmem:[%s593 + $0x8] sm:$0xf]
        %v1525 = vld [vmem:[%s593 + $0xc] sm:$0xf]
        %v1526 = vunpack.c.l.b16 %v1449
        %v1527 = vunpack.c.h.b16 %v1449
        %v1528 = vunpack.c.l.b16 %v1518
        %v1529 = vunpack.c.h.b16 %v1518
        %v1530 = vpack.c.b16 %v1526, %v1526
        %v1531 = vpack.c.b16 %v1527, %v1527
        %v1532 = vpack.c.b16 %v1528, %v1528
        %v1533 = vpack.c.b16 %v1529, %v1529
        %v1534 = vunpack.c.l.b16 %v1515
        %v1535 = vunpack.c.h.b16 %v1515
        %v1536 = vunpack.c.l.b16 %v1521
        %v1537 = vunpack.c.h.b16 %v1521
        %v1538 = vpack.c.b16 %v1534, %v1534
        %v1539 = vpack.c.b16 %v1535, %v1535
        %v1540 = vpack.c.b16 %v1536, %v1536
        %v1541 = vpack.c.b16 %v1537, %v1537
        %v1543 = vsel %vm849, %v1530, 0
        %v1546 = vsel %vm849, %v1538, 0
        %1548 = vmatprep.subr.bf16.mxu0 0
        %1549 = vmatpush1.bf16.xpose.msra.mxu0 %v1546
        %1550 = vmatprep.subr.bf16.mxu0 0
        %1551 = vmatpush1.bf16.xpose.msra.mxu0 0
        %1552 = vmatprep.subr.bf16.mxu0 0
        %1553 = vmatpush1.bf16.xpose.msra.mxu0 0
        %1554 = vmatprep.subr.bf16.mxu0 0
        %1555 = vmatpush1.bf16.xpose.msra.mxu0 0
        %1556 = vmatprep.subr.bf16.mxu0 0
        %1557 = vmatpush1.bf16.xpose.msra.mxu0 0
        %1558 = vmatprep.subr.bf16.mxu0 0
        %1559 = vmatpush1.bf16.xpose.msra.mxu0 0
        %1560 = vmatprep.subr.bf16.mxu0 0
        %1561 = vmatpush1.bf16.xpose.msra.mxu0 0
        %1562 = vmatprep.subr.bf16.mxu0 0
        %1563 = vmatpush1.bf16.xpose.msra.mxu0 0
        %1564 = vmatprep.subr.bf16.mxu0 0
        %1565 = vmatpush1.bf16.xpose.msra.mxu0 0
        %1566 = vmatprep.subr.bf16.mxu0 0
        %1567 = vmatpush1.bf16.xpose.msra.mxu0 0
        %1568 = vmatprep.subr.bf16.mxu0 0
        %1569 = vmatpush1.bf16.xpose.msra.mxu0 0
        %1570 = vmatprep.subr.bf16.mxu0 0
        %1571 = vmatpush1.bf16.xpose.msra.mxu0 0
        %1572 = vmatprep.subr.bf16.mxu0 0
        %1573 = vmatpush1.bf16.xpose.msra.mxu0 0
        %1574 = vmatprep.subr.bf16.mxu0 0
        %1575 = vmatpush1.bf16.xpose.msra.mxu0 0
        %1576 = vmatprep.subr.bf16.mxu0 0
        %1577 = vmatpush1.bf16.xpose.msra.mxu0 0
        %1578 = vmatprep.subr.bf16.mxu0 0
        %1579 = vmatpush1.bf16.xpose.msra.mxu0 0
        %1580 = vmatprep.mubr.bf16.mxu0 0
        %1581 = vmatmul.mubr.bf16.gmra.mrb[0].mxu0 %v1543
        %v1582 = vpop.f32.mrb[0].mxu0
        %v1583 = vadd.f32 0.0, %v1582
        %v1584 = vpop.f32.mrb[0].mxu0
        %v1585 = vpop.f32.mrb[0].mxu0
        %v1586 = vpop.f32.mrb[0].mxu0
        %1587 = vdwg.mxu0
        %v1589 = vsel %vm849, %v1531, 0
        %v1592 = vsel %vm849, %v1539, 0
        %1594 = vmatprep.subr.bf16.mxu0 0
        %1595 = vmatpush1.bf16.xpose.msra.mxu0 %v1592
        %1596 = vmatprep.subr.bf16.mxu0 0
        %1597 = vmatpush1.bf16.xpose.msra.mxu0 0
        %1598 = vmatprep.subr.bf16.mxu0 0
        %1599 = vmatpush1.bf16.xpose.msra.mxu0 0
        %1600 = vmatprep.subr.bf16.mxu0 0
        %1601 = vmatpush1.bf16.xpose.msra.mxu0 0
        %1602 = vmatprep.subr.bf16.mxu0 0
        %1603 = vmatpush1.bf16.xpose.msra.mxu0 0
        %1604 = vmatprep.subr.bf16.mxu0 0
        %1605 = vmatpush1.bf16.xpose.msra.mxu0 0
        %1606 = vmatprep.subr.bf16.mxu0 0
        %1607 = vmatpush1.bf16.xpose.msra.mxu0 0
        %1608 = vmatprep.subr.bf16.mxu0 0
        %1609 = vmatpush1.bf16.xpose.msra.mxu0 0
        %1610 = vmatprep.subr.bf16.mxu0 0
        %1611 = vmatpush1.bf16.xpose.msra.mxu0 0
        %1612 = vmatprep.subr.bf16.mxu0 0
        %1613 = vmatpush1.bf16.xpose.msra.mxu0 0
        %1614 = vmatprep.subr.bf16.mxu0 0
        %1615 = vmatpush1.bf16.xpose.msra.mxu0 0
        %1616 = vmatprep.subr.bf16.mxu0 0
        %1617 = vmatpush1.bf16.xpose.msra.mxu0 0
        %1618 = vmatprep.subr.bf16.mxu0 0
        %1619 = vmatpush1.bf16.xpose.msra.mxu0 0
        %1620 = vmatprep.subr.bf16.mxu0 0
        %1621 = vmatpush1.bf16.xpose.msra.mxu0 0
        %1622 = vmatprep.subr.bf16.mxu0 0
        %1623 = vmatpush1.bf16.xpose.msra.mxu0 0
        %1624 = vmatprep.subr.bf16.mxu0 0
        %1625 = vmatpush1.bf16.xpose.msra.mxu0 0
        %1626 = vmatprep.mubr.bf16.mxu0 0
        %1627 = vmatmul.mubr.bf16.gmra.mrb[0].mxu0 %v1589
        %v1628 = vpop.f32.mrb[0].mxu0
        %v1629 = vadd.f32 0.0, %v1628
        %v1630 = vpop.f32.mrb[0].mxu0
        %v1631 = vpop.f32.mrb[0].mxu0
        %v1632 = vpop.f32.mrb[0].mxu0
        %1633 = vdwg.mxu0
        %v1635 = vsel %vm849, %v1532, 0
        %v1638 = vsel %vm849, %v1540, 0
        %1640 = vmatprep.subr.bf16.mxu0 0
        %1641 = vmatpush1.bf16.xpose.msra.mxu0 %v1638
        %1642 = vmatprep.subr.bf16.mxu0 0
        %1643 = vmatpush1.bf16.xpose.msra.mxu0 0
        %1644 = vmatprep.subr.bf16.mxu0 0
        %1645 = vmatpush1.bf16.xpose.msra.mxu0 0
        %1646 = vmatprep.subr.bf16.mxu0 0
        %1647 = vmatpush1.bf16.xpose.msra.mxu0 0
        %1648 = vmatprep.subr.bf16.mxu0 0
        %1649 = vmatpush1.bf16.xpose.msra.mxu0 0
        %1650 = vmatprep.subr.bf16.mxu0 0
        %1651 = vmatpush1.bf16.xpose.msra.mxu0 0
        %1652 = vmatprep.subr.bf16.mxu0 0
        %1653 = vmatpush1.bf16.xpose.msra.mxu0 0
        %1654 = vmatprep.subr.bf16.mxu0 0
        %1655 = vmatpush1.bf16.xpose.msra.mxu0 0
        %1656 = vmatprep.subr.bf16.mxu0 0
        %1657 = vmatpush1.bf16.xpose.msra.mxu0 0
        %1658 = vmatprep.subr.bf16.mxu0 0
        %1659 = vmatpush1.bf16.xpose.msra.mxu0 0
        %1660 = vmatprep.subr.bf16.mxu0 0
        %1661 = vmatpush1.bf16.xpose.msra.mxu0 0
        %1662 = vmatprep.subr.bf16.mxu0 0
        %1663 = vmatpush1.bf16.xpose.msra.mxu0 0
        %1664 = vmatprep.subr.bf16.mxu0 0
        %1665 = vmatpush1.bf16.xpose.msra.mxu0 0
        %1666 = vmatprep.subr.bf16.mxu0 0
        %1667 = vmatpush1.bf16.xpose.msra.mxu0 0
        %1668 = vmatprep.subr.bf16.mxu0 0
        %1669 = vmatpush1.bf16.xpose.msra.mxu0 0
        %1670 = vmatprep.subr.bf16.mxu0 0
        %1671 = vmatpush1.bf16.xpose.msra.mxu0 0
        %1672 = vmatprep.mubr.bf16.mxu0 0
        %1673 = vmatmul.mubr.bf16.gmra.mrb[0].mxu0 %v1635
        %v1674 = vpop.f32.mrb[0].mxu0
        %v1675 = vadd.f32 0.0, %v1674
        %v1676 = vpop.f32.mrb[0].mxu0
        %v1677 = vpop.f32.mrb[0].mxu0
        %v1678 = vpop.f32.mrb[0].mxu0
        %1679 = vdwg.mxu0
        %v1681 = vsel %vm849, %v1533, 0
        %v1684 = vsel %vm849, %v1541, 0
        %1686 = vmatprep.subr.bf16.mxu0 0
        %1687 = vmatpush1.bf16.xpose.msra.mxu0 %v1684
        %1688 = vmatprep.subr.bf16.mxu0 0
        %1689 = vmatpush1.bf16.xpose.msra.mxu0 0
        %1690 = vmatprep.subr.bf16.mxu0 0
        %1691 = vmatpush1.bf16.xpose.msra.mxu0 0
        %1692 = vmatprep.subr.bf16.mxu0 0
        %1693 = vmatpush1.bf16.xpose.msra.mxu0 0
        %1694 = vmatprep.subr.bf16.mxu0 0
        %1695 = vmatpush1.bf16.xpose.msra.mxu0 0
        %1696 = vmatprep.subr.bf16.mxu0 0
        %1697 = vmatpush1.bf16.xpose.msra.mxu0 0
        %1698 = vmatprep.subr.bf16.mxu0 0
        %1699 = vmatpush1.bf16.xpose.msra.mxu0 0
        %1700 = vmatprep.subr.bf16.mxu0 0
        %1701 = vmatpush1.bf16.xpose.msra.mxu0 0
        %1702 = vmatprep.subr.bf16.mxu0 0
        %1703 = vmatpush1.bf16.xpose.msra.mxu0 0
        %1704 = vmatprep.subr.bf16.mxu0 0
        %1705 = vmatpush1.bf16.xpose.msra.mxu0 0
        %1706 = vmatprep.subr.bf16.mxu0 0
        %1707 = vmatpush1.bf16.xpose.msra.mxu0 0
        %1708 = vmatprep.subr.bf16.mxu0 0
        %1709 = vmatpush1.bf16.xpose.msra.mxu0 0
        %1710 = vmatprep.subr.bf16.mxu0 0
        %1711 = vmatpush1.bf16.xpose.msra.mxu0 0
        %1712 = vmatprep.subr.bf16.mxu0 0
        %1713 = vmatpush1.bf16.xpose.msra.mxu0 0
        %1714 = vmatprep.subr.bf16.mxu0 0
        %1715 = vmatpush1.bf16.xpose.msra.mxu0 0
        %1716 = vmatprep.subr.bf16.mxu0 0
        %1717 = vmatpush1.bf16.xpose.msra.mxu0 0
        %1718 = vmatprep.mubr.bf16.mxu0 0
        %1719 = vmatmul.mubr.bf16.gmra.mrb[0].mxu0 %v1681
        %v1720 = vpop.f32.mrb[0].mxu0
        %v1721 = vadd.f32 0.0, %v1720
        %v1722 = vpop.f32.mrb[0].mxu0
        %v1723 = vpop.f32.mrb[0].mxu0
        %v1724 = vpop.f32.mrb[0].mxu0
        %1725 = vdwg.mxu0
        %v1728 = vunpack.c.l.s4 1966171168
        %v1729 = vunpack.c.0.s8 %v1728
        %v1730 = vlaneseq
        %v1731 = vshrl.u32 %v1730, 7
        %v1732 = vsub.s32 %v1729, %v1731
        %v1733 = vrot.slane %v768, %v1732
        %v1734 = vcombine.high %v1733, %v1733
        %v1736 = vunpack.c.l.s4 1966171168
        %v1737 = vunpack.c.0.s8 %v1736
        %v1738 = vlaneseq
        %v1739 = vshrl.u32 %v1738, 7
        %v1740 = vsub.s32 %v1737, %v1739
        %v1741 = vrot.slane %v1733, %v1740
        %v1743 = vunpack.c.l.s4 1966171168
        %v1744 = vunpack.c.0.s8 %v1743
        %v1745 = vlaneseq
        %v1746 = vshrl.u32 %v1745, 7
        %v1747 = vsub.s32 %v1744, %v1746
        %v1748 = vrot.slane %v1734, %v1747
        %v1749 = vlaneseq
        %v1750 = vshrl.u32 %v1749, 7
        %v1751 = vsub.s32 0, %v1750
        %v1752 = vrot.slane %v1741, %v1751
        %v1753 = vlaneseq
        %v1754 = vshrl.u32 %v1753, 7
        %v1755 = vsub.s32 0, %v1754
        %v1756 = vrot.slane %v1748, %v1755
        %v1759 = vadd.f32 %v1583, %v1752
        %v1760 = vadd.f32 %v1629, %v1756
        %v1761 = vadd.f32 %v1675, %v1752
        %v1762 = vadd.f32 %v1721, %v1756
        %v1763 = vsel %vm1044, %v1759, -inf
        %1764 = vmax.xlane.f32.xlu0 %v1763
        %v1765 = vpop.xlane.xlu0 %1764
        %v1766 = vsel %vm1044, %v1760, -inf
        %1767 = vmax.xlane.f32.xlu0 %v1766
        %v1768 = vpop.xlane.xlu0 %1767
        %v1769 = vsel %vm1044, %v1761, -inf
        %1770 = vmax.xlane.f32.xlu0 %v1769
        %v1771 = vpop.xlane.xlu0 %1770
        %v1772 = vsel %vm1044, %v1762, -inf
        %1773 = vmax.xlane.f32.xlu0 %v1772
        %v1774 = vpop.xlane.xlu0 %1773
        %v1775 = vsub.f32 %v1759, %v1765
        %v1776 = vsub.f32 %v1760, %v1768
        %v1777 = vsub.f32 %v1761, %v1771
        %v1778 = vsub.f32 %v1762, %v1774
        %v1779 = vmul.f32 %v1775, 1.442695
        %v1780 = vpow.pop %v1779
        %v1781 = vmul.f32 %v1776, 1.442695
        %v1782 = vpow.pop %v1781
        %v1783 = vmul.f32 %v1777, 1.442695
        %v1784 = vpow.pop %v1783
        %v1785 = vmul.f32 %v1778, 1.442695
        %v1786 = vpow.pop %v1785
        %v1787 = vsel %vm1044, %v1780, 0.0
        %1788 = vadd.xlane.f32.xlu0 %v1787
        %v1789 = vpop.xlane.xlu0 %1788
        %v1790 = vsel %vm1044, %v1782, 0.0
        %1791 = vadd.xlane.f32.xlu0 %v1790
        %v1792 = vpop.xlane.xlu0 %1791
        %v1793 = vsel %vm1044, %v1784, 0.0
        %1794 = vadd.xlane.f32.xlu0 %v1793
        %v1795 = vpop.xlane.xlu0 %1794
        %v1796 = vsel %vm1044, %v1786, 0.0
        %1797 = vadd.xlane.f32.xlu0 %v1796
        %v1798 = vpop.xlane.xlu0 %1797
        %v1799 = vrcp.pop %v1789
        %v1800 = vmul.f32 %v1780, %v1799
        %v1801 = vrcp.pop %v1792
        %v1802 = vmul.f32 %v1782, %v1801
        %v1803 = vrcp.pop %v1795
        %v1804 = vmul.f32 %v1784, %v1803
        %v1805 = vrcp.pop %v1798
        %v1806 = vmul.f32 %v1786, %v1805
        %v1807 = vpack.c.bf16 %v1800, %v1800
        %v1808 = vpack.c.bf16 %v1802, %v1802
        %v1809 = vpack.c.bf16 %v1804, %v1804
        %v1810 = vpack.c.bf16 %v1806, %v1806
        %1811 = vrot.lane.b32.xlu0 %v1538, 96
        %v1812 = vpop.permute.xlu0 %1811
        %v1814 = vsel %vm1044, %v1807, 0
        %v1817 = vsel %vm1098, %v1812, 0
        %1819 = vmatprep.subr.bf16.mxu0 0
        %1820 = vmatpush1.bf16.msra.mxu0 %v1817
        %1821 = vmatprep.subr.bf16.mxu0 0
        %1822 = vmatpush1.bf16.msra.mxu0 0
        %1823 = vmatprep.subr.bf16.mxu0 0
        %1824 = vmatpush1.bf16.msra.mxu0 0
        %1825 = vmatprep.subr.bf16.mxu0 0
        %1826 = vmatpush1.bf16.msra.mxu0 0
        %1827 = vmatprep.subr.bf16.mxu0 0
        %1828 = vmatpush1.bf16.msra.mxu0 0
        %1829 = vmatprep.subr.bf16.mxu0 0
        %1830 = vmatpush1.bf16.msra.mxu0 0
        %1831 = vmatprep.subr.bf16.mxu0 0
        %1832 = vmatpush1.bf16.msra.mxu0 0
        %1833 = vmatprep.subr.bf16.mxu0 0
        %1834 = vmatpush1.bf16.msra.mxu0 0
        %1835 = vmatprep.subr.bf16.mxu0 0
        %1836 = vmatpush1.bf16.msra.mxu0 0
        %1837 = vmatprep.subr.bf16.mxu0 0
        %1838 = vmatpush1.bf16.msra.mxu0 0
        %1839 = vmatprep.subr.bf16.mxu0 0
        %1840 = vmatpush1.bf16.msra.mxu0 0
        %1841 = vmatprep.subr.bf16.mxu0 0
        %1842 = vmatpush1.bf16.msra.mxu0 0
        %1843 = vmatprep.subr.bf16.mxu0 0
        %1844 = vmatpush1.bf16.msra.mxu0 0
        %1845 = vmatprep.subr.bf16.mxu0 0
        %1846 = vmatpush1.bf16.msra.mxu0 0
        %1847 = vmatprep.subr.bf16.mxu0 0
        %1848 = vmatpush1.bf16.msra.mxu0 0
        %1849 = vmatprep.subr.bf16.mxu0 0
        %1850 = vmatpush1.bf16.msra.mxu0 0
        %1851 = vmatprep.mubr.bf16.mxu0 0
        %1852 = vmatmul.mubr.bf16.gmra.mrb[0].mxu0 %v1814
        %v1853 = vpop.f32.mrb[0].mxu0
        %v1854 = vadd.f32 0.0, %v1853
        %v1855 = vpop.f32.mrb[0].mxu0
        %v1856 = vpop.f32.mrb[0].mxu0
        %v1857 = vpop.f32.mrb[0].mxu0
        %1858 = vdwg.mxu0
        %1859 = vrot.lane.b32.xlu0 %v1539, 96
        %v1860 = vpop.permute.xlu0 %1859
        %v1862 = vsel %vm1044, %v1808, 0
        %v1865 = vsel %vm1098, %v1860, 0
        %1867 = vmatprep.subr.bf16.mxu0 0
        %1868 = vmatpush1.bf16.msra.mxu0 %v1865
        %1869 = vmatprep.subr.bf16.mxu0 0
        %1870 = vmatpush1.bf16.msra.mxu0 0
        %1871 = vmatprep.subr.bf16.mxu0 0
        %1872 = vmatpush1.bf16.msra.mxu0 0
        %1873 = vmatprep.subr.bf16.mxu0 0
        %1874 = vmatpush1.bf16.msra.mxu0 0
        %1875 = vmatprep.subr.bf16.mxu0 0
        %1876 = vmatpush1.bf16.msra.mxu0 0
        %1877 = vmatprep.subr.bf16.mxu0 0
        %1878 = vmatpush1.bf16.msra.mxu0 0
        %1879 = vmatprep.subr.bf16.mxu0 0
        %1880 = vmatpush1.bf16.msra.mxu0 0
        %1881 = vmatprep.subr.bf16.mxu0 0
        %1882 = vmatpush1.bf16.msra.mxu0 0
        %1883 = vmatprep.subr.bf16.mxu0 0
        %1884 = vmatpush1.bf16.msra.mxu0 0
        %1885 = vmatprep.subr.bf16.mxu0 0
        %1886 = vmatpush1.bf16.msra.mxu0 0
        %1887 = vmatprep.subr.bf16.mxu0 0
        %1888 = vmatpush1.bf16.msra.mxu0 0
        %1889 = vmatprep.subr.bf16.mxu0 0
        %1890 = vmatpush1.bf16.msra.mxu0 0
        %1891 = vmatprep.subr.bf16.mxu0 0
        %1892 = vmatpush1.bf16.msra.mxu0 0
        %1893 = vmatprep.subr.bf16.mxu0 0
        %1894 = vmatpush1.bf16.msra.mxu0 0
        %1895 = vmatprep.subr.bf16.mxu0 0
        %1896 = vmatpush1.bf16.msra.mxu0 0
        %1897 = vmatprep.subr.bf16.mxu0 0
        %1898 = vmatpush1.bf16.msra.mxu0 0
        %1899 = vmatprep.mubr.bf16.mxu0 0
        %1900 = vmatmul.mubr.bf16.gmra.mrb[0].mxu0 %v1862
        %v1901 = vpop.f32.mrb[0].mxu0
        %v1902 = vadd.f32 0.0, %v1901
        %v1903 = vpop.f32.mrb[0].mxu0
        %v1904 = vpop.f32.mrb[0].mxu0
        %v1905 = vpop.f32.mrb[0].mxu0
        %1906 = vdwg.mxu0
        %1907 = vrot.lane.b32.xlu0 %v1540, 96
        %v1908 = vpop.permute.xlu0 %1907
        %v1910 = vsel %vm1044, %v1809, 0
        %v1913 = vsel %vm1098, %v1908, 0
        %1915 = vmatprep.subr.bf16.mxu0 0
        %1916 = vmatpush1.bf16.msra.mxu0 %v1913
        %1917 = vmatprep.subr.bf16.mxu0 0
        %1918 = vmatpush1.bf16.msra.mxu0 0
        %1919 = vmatprep.subr.bf16.mxu0 0
        %1920 = vmatpush1.bf16.msra.mxu0 0
        %1921 = vmatprep.subr.bf16.mxu0 0
        %1922 = vmatpush1.bf16.msra.mxu0 0
        %1923 = vmatprep.subr.bf16.mxu0 0
        %1924 = vmatpush1.bf16.msra.mxu0 0
        %1925 = vmatprep.subr.bf16.mxu0 0
        %1926 = vmatpush1.bf16.msra.mxu0 0
        %1927 = vmatprep.subr.bf16.mxu0 0
        %1928 = vmatpush1.bf16.msra.mxu0 0
        %1929 = vmatprep.subr.bf16.mxu0 0
        %1930 = vmatpush1.bf16.msra.mxu0 0
        %1931 = vmatprep.subr.bf16.mxu0 0
        %1932 = vmatpush1.bf16.msra.mxu0 0
        %1933 = vmatprep.subr.bf16.mxu0 0
        %1934 = vmatpush1.bf16.msra.mxu0 0
        %1935 = vmatprep.subr.bf16.mxu0 0
        %1936 = vmatpush1.bf16.msra.mxu0 0
        %1937 = vmatprep.subr.bf16.mxu0 0
        %1938 = vmatpush1.bf16.msra.mxu0 0
        %1939 = vmatprep.subr.bf16.mxu0 0
        %1940 = vmatpush1.bf16.msra.mxu0 0
        %1941 = vmatprep.subr.bf16.mxu0 0
        %1942 = vmatpush1.bf16.msra.mxu0 0
        %1943 = vmatprep.subr.bf16.mxu0 0
        %1944 = vmatpush1.bf16.msra.mxu0 0
        %1945 = vmatprep.subr.bf16.mxu0 0
        %1946 = vmatpush1.bf16.msra.mxu0 0
        %1947 = vmatprep.mubr.bf16.mxu0 0
        %1948 = vmatmul.mubr.bf16.gmra.mrb[0].mxu0 %v1910
        %v1949 = vpop.f32.mrb[0].mxu0
        %v1950 = vadd.f32 0.0, %v1949
        %v1951 = vpop.f32.mrb[0].mxu0
        %v1952 = vpop.f32.mrb[0].mxu0
        %v1953 = vpop.f32.mrb[0].mxu0
        %1954 = vdwg.mxu0
        %1955 = vrot.lane.b32.xlu0 %v1541, 96
        %v1956 = vpop.permute.xlu0 %1955
        %v1958 = vsel %vm1044, %v1810, 0
        %v1961 = vsel %vm1098, %v1956, 0
        %1963 = vmatprep.subr.bf16.mxu0 0
        %1964 = vmatpush1.bf16.msra.mxu0 %v1961
        %1965 = vmatprep.subr.bf16.mxu0 0
        %1966 = vmatpush1.bf16.msra.mxu0 0
        %1967 = vmatprep.subr.bf16.mxu0 0
        %1968 = vmatpush1.bf16.msra.mxu0 0
        %1969 = vmatprep.subr.bf16.mxu0 0
        %1970 = vmatpush1.bf16.msra.mxu0 0
        %1971 = vmatprep.subr.bf16.mxu0 0
        %1972 = vmatpush1.bf16.msra.mxu0 0
        %1973 = vmatprep.subr.bf16.mxu0 0
        %1974 = vmatpush1.bf16.msra.mxu0 0
        %1975 = vmatprep.subr.bf16.mxu0 0
        %1976 = vmatpush1.bf16.msra.mxu0 0
        %1977 = vmatprep.subr.bf16.mxu0 0
        %1978 = vmatpush1.bf16.msra.mxu0 0
        %1979 = vmatprep.subr.bf16.mxu0 0
        %1980 = vmatpush1.bf16.msra.mxu0 0
        %1981 = vmatprep.subr.bf16.mxu0 0
        %1982 = vmatpush1.bf16.msra.mxu0 0
        %1983 = vmatprep.subr.bf16.mxu0 0
        %1984 = vmatpush1.bf16.msra.mxu0 0
        %1985 = vmatprep.subr.bf16.mxu0 0
        %1986 = vmatpush1.bf16.msra.mxu0 0
        %1987 = vmatprep.subr.bf16.mxu0 0
        %1988 = vmatpush1.bf16.msra.mxu0 0
        %1989 = vmatprep.subr.bf16.mxu0 0
        %1990 = vmatpush1.bf16.msra.mxu0 0
        %1991 = vmatprep.subr.bf16.mxu0 0
        %1992 = vmatpush1.bf16.msra.mxu0 0
        %1993 = vmatprep.subr.bf16.mxu0 0
        %1994 = vmatpush1.bf16.msra.mxu0 0
        %1995 = vmatprep.mubr.bf16.mxu0 0
        %1996 = vmatmul.mubr.bf16.gmra.mrb[0].mxu0 %v1958
        %v1997 = vpop.f32.mrb[0].mxu0
        %v1998 = vadd.f32 0.0, %v1997
        %v1999 = vpop.f32.mrb[0].mxu0
        %v2000 = vpop.f32.mrb[0].mxu0
        %v2001 = vpop.f32.mrb[0].mxu0
        %2002 = vdwg.mxu0
        %v2003 = vpack.c.bf16 %v1902, %v1854
        %v2004 = vpack.c.bf16 %v1998, %v1950
        %2006 = vrot.lane.b32.xlu0 %v2004, 16
        %v2007 = vpop.permute.xlu0 %2006
        %v2010 = vsel %vm849, %v2003, %v2007
        %v2015 = vunpack.c.l.b16 %v1522
        %v2016 = vunpack.c.l.b16 %v1523
        %v2017 = vunpack.c.l.b16 %v1524
        %v2018 = vunpack.c.l.b16 %v1525
        %v2019 = vpack.c.b16 %v2016, %v2015
        %v2020 = vpack.c.b16 %v2018, %v2017
        %v2023 = vsel %vm786, %v2010, 0
        %2025 = vmatprep.subr.bf16.mxu0 0
        %2026 = vmatpush1.bf16.msra.mxu0 %v2019
        %2027 = vmatprep.subr.bf16.mxu0 0
        %2028 = vmatpush1.bf16.msra.mxu0 %v2020
        %2029 = vmatprep.subr.bf16.mxu0 0
        %2030 = vmatpush1.bf16.msra.mxu0 0
        %2031 = vmatprep.subr.bf16.mxu0 0
        %2032 = vmatpush1.bf16.msra.mxu0 0
        %2033 = vmatprep.subr.bf16.mxu0 0
        %2034 = vmatpush1.bf16.msra.mxu0 0
        %2035 = vmatprep.subr.bf16.mxu0 0
        %2036 = vmatpush1.bf16.msra.mxu0 0
        %2037 = vmatprep.subr.bf16.mxu0 0
        %2038 = vmatpush1.bf16.msra.mxu0 0
        %2039 = vmatprep.subr.bf16.mxu0 0
        %2040 = vmatpush1.bf16.msra.mxu0 0
        %2041 = vmatprep.subr.bf16.mxu0 0
        %2042 = vmatpush1.bf16.msra.mxu0 0
        %2043 = vmatprep.subr.bf16.mxu0 0
        %2044 = vmatpush1.bf16.msra.mxu0 0
        %2045 = vmatprep.subr.bf16.mxu0 0
        %2046 = vmatpush1.bf16.msra.mxu0 0
        %2047 = vmatprep.subr.bf16.mxu0 0
        %2048 = vmatpush1.bf16.msra.mxu0 0
        %2049 = vmatprep.subr.bf16.mxu0 0
        %2050 = vmatpush1.bf16.msra.mxu0 0
        %2051 = vmatprep.subr.bf16.mxu0 0
        %2052 = vmatpush1.bf16.msra.mxu0 0
        %2053 = vmatprep.subr.bf16.mxu0 0
        %2054 = vmatpush1.bf16.msra.mxu0 0
        %2055 = vmatprep.subr.bf16.mxu0 0
        %2056 = vmatpush1.bf16.msra.mxu0 0
        %2057 = vmatprep.mubr.bf16.mxu0 0
        %2058 = vmatmul.mubr.bf16.gmra.mrb[0].mxu0 %v2023
        %v2059 = vpop.f32.mrb[0].mxu0
        %v2060 = vadd.f32 %v1386, %v2059
        %v2061 = vpop.f32.mrb[0].mxu0
        %v2062 = vpop.f32.mrb[0].mxu0
        %v2063 = vadd.f32 %v1387, %v2062
        %v2064 = vpop.f32.mrb[0].mxu0
        %2065 = vdwg.mxu0
        %v2066 = vsel %vm786, %v2060, 0.0
        %2067 = vadd.xlane.f32.xlu0 %v2066
        %v2068 = vpop.xlane.xlu0 %2067
        %v2069 = vsel %vm786, %v2063, 0.0
        %2070 = vadd.xlane.f32.xlu0 %v2069
        %v2071 = vpop.xlane.xlu0 %2070
        %v2072 = vmul.f32 %v2068, %v1355
        %v2073 = vmul.f32 %v2071, %v1355
        %v2074 = vsub.f32 %v2060, %v2072
        %v2075 = vsub.f32 %v2063, %v2073
        %v2076 = vmul.f32 %v2074, %v2074
        %v2077 = vmul.f32 %v2075, %v2075
        %v2078 = vsel %vm786, %v2076, 0.0
        %2079 = vadd.xlane.f32.xlu0 %v2078
        %v2080 = vpop.xlane.xlu0 %2079
        %v2081 = vsel %vm786, %v2077, 0.0
        %2082 = vadd.xlane.f32.xlu0 %v2081
        %v2083 = vpop.xlane.xlu0 %2082
        %v2084 = vmul.f32 %v2080, %v1355
        %v2085 = vmul.f32 %v2083, %v1355
        %v2086 = vadd.f32 %v2084, 1e-06
        %v2087 = vadd.f32 %v2085, 1e-06
        %v2088 = vrsqrt.pop %v2086
        %v2089 = vrsqrt.pop %v2087
        %v2090 = vmul.f32 %v2074, %v2088
        %v2091 = vmul.f32 %v2075, %v2089
        %v2092 = vlaneseq
        %v2093 = vshrl.u32 %v2092, 7
        %v2094 = vsub.s32 2, %v2093
        %v2095 = vrot.slane %v765, %v2094
        %v2096 = vmul.f32 %v2090, %v2095
        %v2097 = vmul.f32 %v2091, %v2095
        %v2098 = vlaneseq
        %v2099 = vshrl.u32 %v2098, 7
        %v2100 = vsub.s32 3, %v2099
        %v2101 = vrot.slane %v765, %v2100
        %v2102 = vadd.f32 %v2096, %v2101
        %v2103 = vadd.f32 %v2097, %v2101
        %v2104 = vld [vmem:[%s602] sm:$0xf]
        %v2105 = vld [vmem:[%s602 + $0x4] sm:$0xf]
        %v2106 = vld [vmem:[%s602 + $0x8] sm:$0xf]
        %v2107 = vld [vmem:[%s602 + $0xc] sm:$0xf]
        %v2108 = vld [vmem:[%s710] sm:$0x1]
        %v2109 = vld [vmem:[%s703] sm:$0xf]
        %v2110 = vld [vmem:[%s703 + $0x4] sm:$0xf]
        %v2111 = vld [vmem:[%s703 + $0x8] sm:$0xf]
        %v2112 = vld [vmem:[%s703 + $0xc] sm:$0xf]
        %v2113 = vld [vmem:[%s703 + $0x10] sm:$0xf]
        %v2114 = vld [vmem:[%s703 + $0x14] sm:$0xf]
        %v2115 = vld [vmem:[%s703 + $0x18] sm:$0xf]
        %v2116 = vld [vmem:[%s703 + $0x1c] sm:$0xf]
        %v2117 = vpack.c.bf16 %v2103, %v2102
        %v2119 = vlaneseq
        %v2120 = vshrl.u32 %v2119, 7
        %v2121 = vsub.s32 0, %v2120
        %v2122 = vrot.slane %v2108, %v2121
        %v2128 = vunpack.c.l.b16 %v2104
        %v2129 = vunpack.c.l.b16 %v2105
        %v2130 = vunpack.c.l.b16 %v2106
        %v2131 = vunpack.c.l.b16 %v2107
        %v2132 = vpack.c.b16 %v2129, %v2128
        %v2133 = vpack.c.b16 %v2131, %v2130
        %v2137 = vsel %vm786, %v2117, 0
        %2139 = vmatprep.subr.bf16.mxu0 0
        %2140 = vmatpush1.bf16.msra.mxu0 %v2132
        %2141 = vmatprep.subr.bf16.mxu0 0
        %2142 = vmatpush1.bf16.msra.mxu0 %v2133
        %2143 = vmatprep.subr.bf16.mxu0 0
        %2144 = vmatpush1.bf16.msra.mxu0 0
        %2145 = vmatprep.subr.bf16.mxu0 0
        %2146 = vmatpush1.bf16.msra.mxu0 0
        %2147 = vmatprep.subr.bf16.mxu0 0
        %2148 = vmatpush1.bf16.msra.mxu0 0
        %2149 = vmatprep.subr.bf16.mxu0 0
        %2150 = vmatpush1.bf16.msra.mxu0 0
        %2151 = vmatprep.subr.bf16.mxu0 0
        %2152 = vmatpush1.bf16.msra.mxu0 0
        %2153 = vmatprep.subr.bf16.mxu0 0
        %2154 = vmatpush1.bf16.msra.mxu0 0
        %2155 = vmatprep.subr.bf16.mxu0 0
        %2156 = vmatpush1.bf16.msra.mxu0 0
        %2157 = vmatprep.subr.bf16.mxu0 0
        %2158 = vmatpush1.bf16.msra.mxu0 0
        %2159 = vmatprep.subr.bf16.mxu0 0
        %2160 = vmatpush1.bf16.msra.mxu0 0
        %2161 = vmatprep.subr.bf16.mxu0 0
        %2162 = vmatpush1.bf16.msra.mxu0 0
        %2163 = vmatprep.subr.bf16.mxu0 0
        %2164 = vmatpush1.bf16.msra.mxu0 0
        %2165 = vmatprep.subr.bf16.mxu0 0
        %2166 = vmatpush1.bf16.msra.mxu0 0
        %2167 = vmatprep.subr.bf16.mxu0 0
        %2168 = vmatpush1.bf16.msra.mxu0 0
        %2169 = vmatprep.subr.bf16.mxu0 0
        %2170 = vmatpush1.bf16.msra.mxu0 0
        %2171 = vmatprep.mubr.bf16.mxu0 0
        %2172 = vmatmul.mubr.bf16.gmra.mrb[0].mxu0 %v2137
        %v2173 = vpop.f32.mrb[0].mxu0
        %v2174 = vadd.f32 %v2122, %v2173
        %v2175 = vpop.f32.mrb[0].mxu0
        %v2176 = vpop.f32.mrb[0].mxu0
        %v2177 = vadd.f32 %v2122, %v2176
        %v2178 = vpop.f32.mrb[0].mxu0
        %2179 = vdwg.mxu0
        %v2180 = vmax.f32 %v2174, 0.0
        %v2181 = vmax.f32 %v2177, 0.0
        %v2182 = vpack.c.bf16 %v2181, %v2180
        %v2183 = vlaneseq
        %v2184 = vshrl.u32 %v2183, 7
        %v2185 = vsub.s32 4, %v2184
        %v2186 = vrot.slane %v765, %v2185
        %v2195 = vunpack.c.l.b16 %v2109
        %v2196 = vunpack.c.l.b16 %v2110
        %v2197 = vunpack.c.l.b16 %v2111
        %v2198 = vunpack.c.l.b16 %v2112
        %v2199 = vunpack.c.l.b16 %v2113
        %v2200 = vunpack.c.l.b16 %v2114
        %v2201 = vunpack.c.l.b16 %v2115
        %v2202 = vunpack.c.l.b16 %v2116
        %v2203 = vpack.c.b16 %v2196, %v2195
        %v2204 = vpack.c.b16 %v2198, %v2197
        %v2205 = vpack.c.b16 %v2200, %v2199
        %v2206 = vpack.c.b16 %v2202, %v2201
        %vm2211 = vcmask 523264
        %v2213 = vsel %vm2211, %v2182, 0
        %2215 = vmatprep.subr.bf16.mxu0 0
        %2216 = vmatpush1.bf16.msra.mxu0 %v2203
        %2217 = vmatprep.subr.bf16.mxu0 0
        %2218 = vmatpush1.bf16.msra.mxu0 %v2204
        %2219 = vmatprep.subr.bf16.mxu0 0
        %2220 = vmatpush1.bf16.msra.mxu0 %v2205
        %2221 = vmatprep.subr.bf16.mxu0 0
        %2222 = vmatpush1.bf16.msra.mxu0 %v2206
        %2223 = vmatprep.subr.bf16.mxu0 0
        %2224 = vmatpush1.bf16.msra.mxu0 0
        %2225 = vmatprep.subr.bf16.mxu0 0
        %2226 = vmatpush1.bf16.msra.mxu0 0
        %2227 = vmatprep.subr.bf16.mxu0 0
        %2228 = vmatpush1.bf16.msra.mxu0 0
        %2229 = vmatprep.subr.bf16.mxu0 0
        %2230 = vmatpush1.bf16.msra.mxu0 0
        %2231 = vmatprep.subr.bf16.mxu0 0
        %2232 = vmatpush1.bf16.msra.mxu0 0
        %2233 = vmatprep.subr.bf16.mxu0 0
        %2234 = vmatpush1.bf16.msra.mxu0 0
        %2235 = vmatprep.subr.bf16.mxu0 0
        %2236 = vmatpush1.bf16.msra.mxu0 0
        %2237 = vmatprep.subr.bf16.mxu0 0
        %2238 = vmatpush1.bf16.msra.mxu0 0
        %2239 = vmatprep.subr.bf16.mxu0 0
        %2240 = vmatpush1.bf16.msra.mxu0 0
        %2241 = vmatprep.subr.bf16.mxu0 0
        %2242 = vmatpush1.bf16.msra.mxu0 0
        %2243 = vmatprep.subr.bf16.mxu0 0
        %2244 = vmatpush1.bf16.msra.mxu0 0
        %2245 = vmatprep.subr.bf16.mxu0 0
        %2246 = vmatpush1.bf16.msra.mxu0 0
        %2247 = vmatprep.mubr.bf16.mxu0 0
        %2248 = vmatmul.mubr.bf16.gmra.mrb[0].mxu0 %v2213
        %v2249 = vpop.f32.mrb[0].mxu0
        %v2250 = vadd.f32 %v2186, %v2249
        %v2251 = vpop.f32.mrb[0].mxu0
        %v2252 = vpop.f32.mrb[0].mxu0
        %v2253 = vadd.f32 %v2186, %v2252
        %v2254 = vpop.f32.mrb[0].mxu0
        %2255 = vdwg.mxu0
        %v2256 = vadd.f32 %v2250, %v2102
        %v2257 = vadd.f32 %v2253, %v2103
        %v2258 = vsel %vm786, %v2256, 0.0
        %2259 = vadd.xlane.f32.xlu0 %v2258
        %v2260 = vpop.xlane.xlu0 %2259
        %v2261 = vsel %vm786, %v2257, 0.0
        %2262 = vadd.xlane.f32.xlu0 %v2261
        %v2263 = vpop.xlane.xlu0 %2262
        %v2264 = vmul.f32 %v2260, %v1355
        %v2265 = vmul.f32 %v2263, %v1355
        %v2266 = vsub.f32 %v2256, %v2264
        %v2267 = vsub.f32 %v2257, %v2265
        %v2268 = vmul.f32 %v2266, %v2266
        %v2269 = vmul.f32 %v2267, %v2267
        %v2270 = vsel %vm786, %v2268, 0.0
        %2271 = vadd.xlane.f32.xlu0 %v2270
        %v2272 = vpop.xlane.xlu0 %2271
        %v2273 = vsel %vm786, %v2269, 0.0
        %2274 = vadd.xlane.f32.xlu0 %v2273
        %v2275 = vpop.xlane.xlu0 %2274
        %v2276 = vmul.f32 %v2272, %v1355
        %v2277 = vmul.f32 %v2275, %v1355
        %v2278 = vadd.f32 %v2276, 1e-06
        %v2279 = vadd.f32 %v2277, 1e-06
        %v2280 = vrsqrt.pop %v2278
        %v2281 = vrsqrt.pop %v2279
        %v2282 = vmul.f32 %v2266, %v2280
        %v2283 = vmul.f32 %v2267, %v2281
        %v2284 = vlaneseq
        %v2285 = vshrl.u32 %v2284, 7
        %v2286 = vsub.s32 5, %v2285
        %v2287 = vrot.slane %v765, %v2286
        %v2288 = vmul.f32 %v2282, %v2287
        %v2289 = vmul.f32 %v2283, %v2287
        %v2290 = vlaneseq
        %v2291 = vshrl.u32 %v2290, 7
        %v2292 = vsub.s32 6, %v2291
        %v2293 = vrot.slane %v765, %v2292
        %v2294 = vadd.f32 %v2288, %v2293
        %v2295 = vadd.f32 %v2289, %v2293
        %2296 = vst.msk [vmem:[#allocation14] sm:$0xff] %vm786, %v2294
        %2297 = vst.msk [vmem:[#allocation14 + $0x8] sm:$0xff] %vm786, %v2295
        // Predicated region
        $region109: #{tpu_custom_call.1} parent=75 // pred_check
          %p2298 = pneg %p384
        $region110: #{tpu_custom_call.1} parent=75 // pred_check_branch
          %2300 = sbr.rel (%p2298) target = $region112
        $region111: #{tpu_custom_call.1} parent=75 // pred_region
          %s2302 = ssub.s32 256, 256
          %2303 = vsyncadd [#allocation4], %s2302
          %s2304 = sshll.u32 [#allocation14], 4
          %s2305 = int_to_ptr.vmem [resolvable:$true] %s2304
          %2310 = dma.vmem_to_hbm [thread:$0]  %s2305, 256, %s14, [#allocation4], 128, 128, 8
        $region112: #{tpu_custom_call.1} parent=75 // pred_fallthru
          _
        // Predicated region
        $region113: #{tpu_custom_call.1} parent=75 // pred_check
          %p2311 = pneg %p384
        $region114: #{tpu_custom_call.1} parent=75 // pred_check_branch
          %2313 = sbr.rel (%p2311) target = $region116
        $region115: #{tpu_custom_call.1} parent=75 // pred_region
          %2314 = dma.done [#allocation4], 256
        $region116: #{tpu_custom_call.1} parent=75 // pred_fallthru
          _
      $region76: #{tpu_custom_call.1} parent=5 // pred_fallthru
        _
      %p2315 = scmp.le.s32.totalorder 2, %s27
      // Predicated region
      $region117: #{tpu_custom_call.1} parent=5 // pred_check
        %p2316 = pneg %p2315
      $region118: #{tpu_custom_call.1} parent=5 // pred_check_branch
        %2318 = sbr.rel (%p2316) target = $region120
      $region119: #{tpu_custom_call.1} parent=5 // pred_region
        %s2319 = ssub.s32 %s27, 2
      $region120: #{tpu_custom_call.1} parent=5 // pred_fallthru
        _
    $region6: #{tpu_custom_call.1} parent=1 // loop_footer
      %s31 = sadd.s32 1, %s27
    $region7: #{tpu_custom_call.1} parent=1 // loop_footer_branch
      %26 = sbr.rel target = $region3
    $region8: #{tpu_custom_call.1} parent=1 // loop_exit
      _
    %2320 = vsyncpa [#allocation3], 1
    %s2321 = scalar_lea.sflag [#allocation3], 1
    %2322 = vsyncpa %s2321, 1
    %2323 = vsyncpa [#allocation6], 1
    %2324 = vsyncpa [#allocation9], 1
    %2325 = vsyncpa [#allocation12], 1
    %s2326 = scalar_lea.sflag [#allocation12], 1
    %2327 = vsyncpa %s2326, 1
    %2328 = vsyncpa [#allocation4], 1
    %s2329 = scalar_lea.sflag [#allocation4], 1
    %2330 = vsyncpa %s2329, 1

</llo_original>
